<compile_context>
chip_gen: v7x
topology: tpu7x:2x2x1
jax: 0.10.0
libtpu: 0.0.40
codegen_flags: <defaults>
</compile_context>

<pallas_src>
import functools

import jax
import jax.numpy as jnp
from jax import lax
from jax.experimental import pallas as pl
from jax.experimental.pallas import tpu as pltpu


def _conv_kernel(x_ref, w_ref, b_ref, o_ref, shift_ref, *, ksize, chunk):
    """Fused transpose + 'same' conv (Cin=1) + bias for one (batch, W-tile) step.

    x_ref    : (1, H, W)           VMEM  - full single-channel image of batch n
    w_ref    : (C*KH*KW,)          SMEM  - flattened torch Conv2d weights
    b_ref    : (C,)                SMEM  - bias
    o_ref    : (1, C, TW, H)       VMEM  - output tile, W rows [wt*TW, wt*TW+TW)
    shift_ref: (KW, W+2*ph, H) f32 VMEM  - KW lane-pre-shifted, W-padded transposed
                                           planes (built once per batch element)
    """
    kh, kw = ksize
    ph, pw = (kh - 1) // 2, (kw - 1) // 2
    H = x_ref.shape[1]
    W = x_ref.shape[2]
    C = o_ref.shape[1]
    TW = o_ref.shape[2]
    ntaps = kh * kw

    wt = pl.program_id(1)

    # ---- once per batch element: transpose + pad + hoist the KW lane shifts -------
    # Correctness note: this relies on (a) the W-tile axis being the innermost,
    # sequentially ordered ("arbitrary") grid axis and (b) scratch persistence across
    # grid steps, so the planes built at wt == 0 belong to the current n.
    @pl.when(wt == 0)
    def _build_shift_planes():
        x = x_ref[0].astype(jnp.float32)                       # (H, W)
        if pw > 0:                                             # pad H via sublane concat
            zh = jnp.zeros((pw, W), jnp.float32)
            x = jnp.concatenate([zh, x, zh], axis=0)           # (H + 2*pw, W)
        xt = x.T                                               # (W, H + 2*pw)  (XLU)
        if ph > 0:
            zrow = jnp.zeros((ph, H), jnp.float32)
        for q in range(kw):
            # lane shift done here, once per batch element (not per W tile)
            shift_ref[q, ph:ph + W, :] = xt[:, q:q + H]
            if ph > 0:                                         # zero 'same'-padding halo rows
                shift_ref[q, 0:ph, :] = zrow
                shift_ref[q, ph + W:ph + W + ph, :] = zrow

    # ---- per W-tile: chunked, channel-unrolled tap contraction (VPU) -------------
    w0 = pl.multiple_of(wt * TW, 8) if TW % 8 == 0 else wt * TW

    def emit_chunk(cs, csize):
        # load the kh*kw taps for this chunk once; they stay in vregs across all C
        taps = []
        for p in range(kh):
            for q in range(kw):
                taps.append(shift_ref[q, pl.ds(w0 + cs + p, csize), :])   # (csize, H)
        for c in range(C):                      # fully unrolled: static SMEM offsets
            base = c * ntaps
            acc = taps[0] * w_ref[base]
            for k in range(1, ntaps):
                acc = acc + taps[k] * w_ref[base + k]
            acc = acc + b_ref[c]
            o_ref[0, c, pl.ds(cs, csize), :] = acc.astype(o_ref.dtype)

    n_chunks = TW // chunk
    rem = TW - n_chunks * chunk

    if n_chunks == 1:
        emit_chunk(0, chunk)                    # static offset, fully visible to LLO
    elif n_chunks > 1:
        def chunk_body(i, carry):
            emit_chunk(pl.multiple_of(i * chunk, chunk), chunk)
            return carry
        unroll = n_chunks if n_chunks <= 4 else 2
        lax.fori_loop(0, n_chunks, chunk_body, 0, unroll=unroll)
    if rem > 0:                                 # static tail chunk
        emit_chunk(n_chunks * chunk, rem)


def _vmem_capacity_bytes():
    try:
        return int(pltpu.get_tpu_info().vmem_capacity_bytes)
    except Exception:
        return 64 * 1024 * 1024                 # conservative (v7x per-TC VMEM)


def _tile_budget_bytes(vmem_cap):
    # ~1/16 of VMEM per output tile: 8 MiB on 128 MiB chips (v5e/v6e), 4 MiB on v7x.
    return min(max(vmem_cap // 16, 2 * 1024 * 1024), 16 * 1024 * 1024)


def _pick_tile_w(W, C, H, N, budget_bytes, min_steps=4):
    """Largest multiple-of-8 divisor of W whose (C, TW, H) f32 output tile fits the
    budget, preferring tiles that give at least `min_steps` total grid steps so the
    output-writeback DMA can be double-buffered. Falls back to full W (always a legal
    block) when no multiple-of-8 divisor fits."""
    bytes_per_w = C * H * 4
    max_tw = max(1, budget_bytes // bytes_per_w)
    divs8 = [d for d in range(8, W + 1, 8) if W % d == 0]
    cands = [d for d in divs8 if d <= max_tw]
    if not cands:
        return W
    deep = [d for d in cands if N * (W // d) >= min_steps]
    return max(deep) if deep else max(cands)


def _pick_chunk(H, tile_w):
    # keep 9 taps x chunk rows resident in vregs (~36 vregs max)
    lanes_per_row = -(-H // 128)
    chunk = max(8, ((32 // lanes_per_row) // 8) * 8)
    return min(chunk, tile_w)


def input_projection(images, weight, bias, *, tile_w=None):
    """images: (N, H, W, 1); weight: (C, 1, KH, KW) torch layout; bias: (C,).
    Returns (N, C, W, H) == Conv2d(1, C, K, padding='same')(images.transpose(3, 1))."""
    N, H, W, cin = images.shape
    if cin != 1:
        raise ValueError("InputProjectionLayer expects a single input channel")
    C, cin_w, KH, KW = weight.shape
    assert cin_w == 1
    assert KH % 2 == 1 and KW % 2 == 1, "padding='same' path assumes odd kernel size"
    ph = (KH - 1) // 2

    # Only a trailing singleton squeeze + tiny weight reshape in the wrapper: no
    # full-tensor transpose / pad round trips through HBM.
    x = images[..., 0]                                    # (N, H, W)
    w_flat = weight.astype(jnp.float32).reshape(-1)       # (C*KH*KW,) -> SMEM scalars
    b = bias.astype(jnp.float32)                          # (C,)       -> SMEM scalars

    vmem_cap = _vmem_capacity_bytes()
    if tile_w is None:
        tile_w = _pick_tile_w(W, C, H, N, _tile_budget_bytes(vmem_cap))
    if W % tile_w != 0:
        raise ValueError(f"tile_w={tile_w} must divide W={W}")
    if tile_w != W and tile_w % 8 != 0:
        raise ValueError(f"tile_w={tile_w} must be a multiple of 8 (or equal to W)")
    n_wt = W // tile_w
    chunk = _pick_chunk(H, tile_w)

    kernel = functools.partial(_conv_kernel, ksize=(KH, KW), chunk=chunk)

    # VMEM limit from the actual footprint (double-buffered in/out + scratch + margin),
    # clamped so it stays comfortably inside every generation's physical VMEM.
    in_bytes = H * W * 4
    out_bytes = C * tile_w * H * 4
    scratch_bytes = KW * (W + 2 * ph) * H * 4
    need = 2 * in_bytes + 2 * out_bytes + scratch_bytes
    vmem_limit = max(int(1.5 * need) + (4 << 20), 32 << 20)
    vmem_limit = min(vmem_limit, max(vmem_cap - (8 << 20), 32 << 20))

    flops = 2 * N * C * W * H * KH * KW + N * C * W * H          # conv MACs + bias
    bytes_accessed = 4 * (N * H * W + N * C * W * H + w_flat.size + C)

    return pl.pallas_call(
        kernel,
        out_shape=jax.ShapeDtypeStruct((N, C, W, H), images.dtype),
        grid=(N, n_wt),
        in_specs=[
            # full image per batch element; block index constant in wt => DMA'd only
            # when n changes (no re-fetch across W tiles)
            pl.BlockSpec((1, H, W), lambda n, wt: (n, 0, 0)),
            pl.BlockSpec(memory_space=pltpu.MemorySpace.SMEM),   # conv weights
            pl.BlockSpec(memory_space=pltpu.MemorySpace.SMEM),   # bias
        ],
        out_specs=pl.BlockSpec((1, C, tile_w, H), lambda n, wt: (n, 0, wt, 0)),
        scratch_shapes=[pltpu.VMEM((KW, W + 2 * ph, H), jnp.float32)],
        compiler_params=pltpu.CompilerParams(
            # batch axis megacore-shardable; W-tile axis must stay "arbitrary" because
            # the shift-plane scratch is built at wt == 0 and reused across the tiles
            # of the same batch element (see TODO(synk) in the header for v7x).
            dimension_semantics=("parallel", "arbitrary"),
            vmem_limit_bytes=int(vmem_limit)),
        cost_estimate=pl.CostEstimate(
            flops=flops, transcendentals=0, bytes_accessed=bytes_accessed),
    )(x, w_flat, b)


def _reference(images, weight, bias):
    """Pure-JAX reference matching the PyTorch module exactly."""
    x = jnp.transpose(images, (0, 3, 2, 1))               # == torch.transpose(images, 3, 1)
    y = lax.conv_general_dilated(
        x, weight, window_strides=(1, 1), padding="SAME",
        dimension_numbers=("NCHW", "OIHW", "NCHW"),
        precision=lax.Precision.HIGHEST)
    return y + bias[None, :, None, None]


if __name__ == "__main__":
    # Small deterministic shapes consistent with the module's forward:
    # images (N, H, W, 1) -> output (N, num_channels, W, H).  H != W to catch
    # transposition bugs; W chosen so the auto tile (40) exercises both the chunked
    # compute and the static tail chunk, and the grid has several W tiles.
    N, C, H, W = 2, 8, 126, 120
    KH = KW = 3

    key = jax.random.PRNGKey(0)
    k_x, k_w, k_b = jax.random.split(key, 3)
    images = jax.random.normal(k_x, (N, H, W, 1), dtype=jnp.float32)
    weight = jax.random.normal(k_w, (C, 1, KH, KW), dtype=jnp.float32) * 0.2
    bias = jax.random.normal(k_b, (C,), dtype=jnp.float32) * 0.1

    ref = jax.block_until_ready(_reference(images, weight, bias))

    # auto-picked (VMEM-budgeted, >=4-grid-step) tile
    out = jax.block_until_ready(input_projection(images, weight, bias))
    assert out.shape == (N, C, W, H), out.shape
    err = float(jnp.max(jnp.abs(out - ref)))
    assert jnp.allclose(out, ref, atol=1e-4, rtol=1e-4), err

    # explicit full-W tile (grid (N, 1)): exercises the fori_loop chunk path + tail
    out2 = jax.block_until_ready(input_projection(images, weight, bias, tile_w=W))
    err2 = float(jnp.max(jnp.abs(out2 - ref)))
    assert jnp.allclose(out2, ref, atol=1e-4, rtol=1e-4), err2

    print("KERNEL_OK")
</pallas_src>

<mosaic_0001>
module attributes {stable_mosaic.version = 11 : i64} {
  func.func @_conv_kernel(%arg0: i32, %arg1: i32, %arg2: memref<1x126x120xf32, #tpu.memory_space<vmem>>, %arg3: memref<72xf32, #tpu.memory_space<smem>>, %arg4: memref<8xf32, #tpu.memory_space<smem>>, %arg5: memref<1x8x40x126xf32, #tpu.memory_space<vmem>>, %arg6: memref<3x122x126xf32, #tpu.memory_space<vmem>>) attributes {dimension_semantics = [#tpu.dimension_semantics<parallel>, #tpu.dimension_semantics<arbitrary>], iteration_bounds = array<i64: 2, 3>, scalar_prefetch = 0 : i64, scratch_operands = 1 : i64, tpu.core_type = #tpu.core_type<tc>, window_params = [{transform_indices = @transform_0, window_bounds = array<i64: 1, 126, 120>}, {transform_indices = @transform_1, window_bounds = array<i64: 72>}, {transform_indices = @transform_2, window_bounds = array<i64: 8>}, {transform_indices = @transform_3, window_bounds = array<i64: 1, 8, 40, 126>}]} {
    %c0_i32 = arith.constant 0 : i32
    %0 = arith.cmpi eq, %arg1, %c0_i32 : i32
    %1 = arith.extui %0 : i1 to i32
    %c0_i32_0 = arith.constant 0 : i32
    %2 = arith.cmpi ne, %1, %c0_i32_0 : i32
    scf.if %2 {
      %c0_222 = arith.constant 0 : index
      %c0_223 = arith.constant 0 : index
      %c0_224 = arith.constant 0 : index
      %751 = vector.load %arg2[%c0_222, %c0_223, %c0_224] : memref<1x126x120xf32, #tpu.memory_space<vmem>>, vector<1x126x120xf32>
      %752 = vector.shape_cast %751 : vector<1x126x120xf32> to vector<126x120xf32>
      %cst = arith.constant 0.000000e+00 : f32
      %753 = vector.broadcast %cst : f32 to vector<1x120xf32>
      %754 = tpu.concatenate %753, %752, %753 in 0 : vector<1x120xf32>, vector<126x120xf32>, vector<1x120xf32> -> vector<128x120xf32>
      %755 = tpu.transpose %754, [1, 0] : vector<128x120xf32> -> vector<120x128xf32>
      %cst_225 = arith.constant 0.000000e+00 : f32
      %756 = vector.broadcast %cst_225 : f32 to vector<1x126xf32>
      %757 = vector.extract_strided_slice %755 {offsets = [0, 0], sizes = [120, 126], strides = [1, 1]} : vector<120x128xf32> to vector<120x126xf32>
      %c0_226 = arith.constant 0 : index
      %c1_227 = arith.constant 1 : index
      %c0_228 = arith.constant 0 : index
      %758 = vector.load %arg6[%c0_226, %c1_227, %c0_228] : memref<3x122x126xf32, #tpu.memory_space<vmem>>, vector<1x120x126xf32>
      %759 = vector.shape_cast %758 : vector<1x120x126xf32> to vector<120x126xf32>
      %760 = vector.shape_cast %757 : vector<120x126xf32> to vector<1x120x126xf32>
      tpu.vector_store %arg6[%c0_226, %c1_227, %c0_228], %760 {strides = array<i32>} : memref<3x122x126xf32, #tpu.memory_space<vmem>>, vector<1x120x126xf32>,
      %c0_229 = arith.constant 0 : index
      %c0_230 = arith.constant 0 : index
      %c0_231 = arith.constant 0 : index
      %761 = vector.load %arg6[%c0_229, %c0_230, %c0_231] : memref<3x122x126xf32, #tpu.memory_space<vmem>>, vector<1x1x126xf32>
      %762 = vector.shape_cast %761 : vector<1x1x126xf32> to vector<1x126xf32>
      %763 = vector.shape_cast %756 : vector<1x126xf32> to vector<1x1x126xf32>
      tpu.vector_store %arg6[%c0_229, %c0_230, %c0_231], %763 {strides = array<i32>} : memref<3x122x126xf32, #tpu.memory_space<vmem>>, vector<1x1x126xf32>,
      %c0_232 = arith.constant 0 : index
      %c121 = arith.constant 121 : index
      %c0_233 = arith.constant 0 : index
      %764 = vector.load %arg6[%c0_232, %c121, %c0_233] : memref<3x122x126xf32, #tpu.memory_space<vmem>>, vector<1x1x126xf32>
      %765 = vector.shape_cast %764 : vector<1x1x126xf32> to vector<1x126xf32>
      %766 = vector.shape_cast %756 : vector<1x126xf32> to vector<1x1x126xf32>
      tpu.vector_store %arg6[%c0_232, %c121, %c0_233], %766 {strides = array<i32>} : memref<3x122x126xf32, #tpu.memory_space<vmem>>, vector<1x1x126xf32>,
      %767 = vector.extract_strided_slice %755 {offsets = [0, 1], sizes = [120, 126], strides = [1, 1]} : vector<120x128xf32> to vector<120x126xf32>
      %c1_234 = arith.constant 1 : index
      %c1_235 = arith.constant 1 : index
      %c0_236 = arith.constant 0 : index
      %768 = vector.load %arg6[%c1_234, %c1_235, %c0_236] : memref<3x122x126xf32, #tpu.memory_space<vmem>>, vector<1x120x126xf32>
      %769 = vector.shape_cast %768 : vector<1x120x126xf32> to vector<120x126xf32>
      %770 = vector.shape_cast %767 : vector<120x126xf32> to vector<1x120x126xf32>
      tpu.vector_store %arg6[%c1_234, %c1_235, %c0_236], %770 {strides = array<i32>} : memref<3x122x126xf32, #tpu.memory_space<vmem>>, vector<1x120x126xf32>,
      %c1_237 = arith.constant 1 : index
      %c0_238 = arith.constant 0 : index
      %c0_239 = arith.constant 0 : index
      %771 = vector.load %arg6[%c1_237, %c0_238, %c0_239] : memref<3x122x126xf32, #tpu.memory_space<vmem>>, vector<1x1x126xf32>
      %772 = vector.shape_cast %771 : vector<1x1x126xf32> to vector<1x126xf32>
      %773 = vector.shape_cast %756 : vector<1x126xf32> to vector<1x1x126xf32>
      tpu.vector_store %arg6[%c1_237, %c0_238, %c0_239], %773 {strides = array<i32>} : memref<3x122x126xf32, #tpu.memory_space<vmem>>, vector<1x1x126xf32>,
      %c1_240 = arith.constant 1 : index
      %c121_241 = arith.constant 121 : index
      %c0_242 = arith.constant 0 : index
      %774 = vector.load %arg6[%c1_240, %c121_241, %c0_242] : memref<3x122x126xf32, #tpu.memory_space<vmem>>, vector<1x1x126xf32>
      %775 = vector.shape_cast %774 : vector<1x1x126xf32> to vector<1x126xf32>
      %776 = vector.shape_cast %756 : vector<1x126xf32> to vector<1x1x126xf32>
      tpu.vector_store %arg6[%c1_240, %c121_241, %c0_242], %776 {strides = array<i32>} : memref<3x122x126xf32, #tpu.memory_space<vmem>>, vector<1x1x126xf32>,
      %777 = vector.extract_strided_slice %755 {offsets = [0, 2], sizes = [120, 126], strides = [1, 1]} : vector<120x128xf32> to vector<120x126xf32>
      %c2_243 = arith.constant 2 : index
      %c1_244 = arith.constant 1 : index
      %c0_245 = arith.constant 0 : index
      %778 = vector.load %arg6[%c2_243, %c1_244, %c0_245] : memref<3x122x126xf32, #tpu.memory_space<vmem>>, vector<1x120x126xf32>
      %779 = vector.shape_cast %778 : vector<1x120x126xf32> to vector<120x126xf32>
      %780 = vector.shape_cast %777 : vector<120x126xf32> to vector<1x120x126xf32>
      tpu.vector_store %arg6[%c2_243, %c1_244, %c0_245], %780 {strides = array<i32>} : memref<3x122x126xf32, #tpu.memory_space<vmem>>, vector<1x120x126xf32>,
      %c2_246 = arith.constant 2 : index
      %c0_247 = arith.constant 0 : index
      %c0_248 = arith.constant 0 : index
      %781 = vector.load %arg6[%c2_246, %c0_247, %c0_248] : memref<3x122x126xf32, #tpu.memory_space<vmem>>, vector<1x1x126xf32>
      %782 = vector.shape_cast %781 : vector<1x1x126xf32> to vector<1x126xf32>
      %783 = vector.shape_cast %756 : vector<1x126xf32> to vector<1x1x126xf32>
      tpu.vector_store %arg6[%c2_246, %c0_247, %c0_248], %783 {strides = array<i32>} : memref<3x122x126xf32, #tpu.memory_space<vmem>>, vector<1x1x126xf32>,
      %c2_249 = arith.constant 2 : index
      %c121_250 = arith.constant 121 : index
      %c0_251 = arith.constant 0 : index
      %784 = vector.load %arg6[%c2_249, %c121_250, %c0_251] : memref<3x122x126xf32, #tpu.memory_space<vmem>>, vector<1x1x126xf32>
      %785 = vector.shape_cast %784 : vector<1x1x126xf32> to vector<1x126xf32>
      %786 = vector.shape_cast %756 : vector<1x126xf32> to vector<1x1x126xf32>
      tpu.vector_store %arg6[%c2_249, %c121_250, %c0_251], %786 {strides = array<i32>} : memref<3x122x126xf32, #tpu.memory_space<vmem>>, vector<1x1x126xf32>,
    } else {
    }
    %c40_i32 = arith.constant 40 : i32
    %3 = arith.muli %arg1, %c40_i32 : i32
    %4 = tpu.assume_multiple %3, 8 : i32
    %c0_i32_1 = arith.constant 0 : i32
    %5 = arith.addi %4, %c0_i32_1 : i32
    %c0_i32_2 = arith.constant 0 : i32
    %6 = arith.addi %5, %c0_i32_2 : i32
    %c0 = arith.constant 0 : index
    %7 = arith.index_cast %6 : i32 to index
    %c0_3 = arith.constant 0 : index
    %8 = vector.load %arg6[%c0, %7, %c0_3] : memref<3x122x126xf32, #tpu.memory_space<vmem>>, vector<1x32x126xf32>
    %9 = vector.shape_cast %8 : vector<1x32x126xf32> to vector<32x126xf32>
    %c0_i32_4 = arith.constant 0 : i32
    %10 = arith.addi %4, %c0_i32_4 : i32
    %c0_i32_5 = arith.constant 0 : i32
    %11 = arith.addi %10, %c0_i32_5 : i32
    %c1 = arith.constant 1 : index
    %12 = arith.index_cast %11 : i32 to index
    %c0_6 = arith.constant 0 : index
    %13 = vector.load %arg6[%c1, %12, %c0_6] : memref<3x122x126xf32, #tpu.memory_space<vmem>>, vector<1x32x126xf32>
    %14 = vector.shape_cast %13 : vector<1x32x126xf32> to vector<32x126xf32>
    %c0_i32_7 = arith.constant 0 : i32
    %15 = arith.addi %4, %c0_i32_7 : i32
    %c0_i32_8 = arith.constant 0 : i32
    %16 = arith.addi %15, %c0_i32_8 : i32
    %c2 = arith.constant 2 : index
    %17 = arith.index_cast %16 : i32 to index
    %c0_9 = arith.constant 0 : index
    %18 = vector.load %arg6[%c2, %17, %c0_9] : memref<3x122x126xf32, #tpu.memory_space<vmem>>, vector<1x32x126xf32>
    %19 = vector.shape_cast %18 : vector<1x32x126xf32> to vector<32x126xf32>
    %c0_i32_10 = arith.constant 0 : i32
    %20 = arith.addi %4, %c0_i32_10 : i32
    %c1_i32 = arith.constant 1 : i32
    %21 = arith.addi %20, %c1_i32 : i32
    %c0_11 = arith.constant 0 : index
    %22 = arith.index_cast %21 : i32 to index
    %c0_12 = arith.constant 0 : index
    %23 = vector.load %arg6[%c0_11, %22, %c0_12] : memref<3x122x126xf32, #tpu.memory_space<vmem>>, vector<1x32x126xf32>
    %24 = vector.shape_cast %23 : vector<1x32x126xf32> to vector<32x126xf32>
    %c0_i32_13 = arith.constant 0 : i32
    %25 = arith.addi %4, %c0_i32_13 : i32
    %c1_i32_14 = arith.constant 1 : i32
    %26 = arith.addi %25, %c1_i32_14 : i32
    %c1_15 = arith.constant 1 : index
    %27 = arith.index_cast %26 : i32 to index
    %c0_16 = arith.constant 0 : index
    %28 = vector.load %arg6[%c1_15, %27, %c0_16] : memref<3x122x126xf32, #tpu.memory_space<vmem>>, vector<1x32x126xf32>
    %29 = vector.shape_cast %28 : vector<1x32x126xf32> to vector<32x126xf32>
    %c0_i32_17 = arith.constant 0 : i32
    %30 = arith.addi %4, %c0_i32_17 : i32
    %c1_i32_18 = arith.constant 1 : i32
    %31 = arith.addi %30, %c1_i32_18 : i32
    %c2_19 = arith.constant 2 : index
    %32 = arith.index_cast %31 : i32 to index
    %c0_20 = arith.constant 0 : index
    %33 = vector.load %arg6[%c2_19, %32, %c0_20] : memref<3x122x126xf32, #tpu.memory_space<vmem>>, vector<1x32x126xf32>
    %34 = vector.shape_cast %33 : vector<1x32x126xf32> to vector<32x126xf32>
    %c0_i32_21 = arith.constant 0 : i32
    %35 = arith.addi %4, %c0_i32_21 : i32
    %c2_i32 = arith.constant 2 : i32
    %36 = arith.addi %35, %c2_i32 : i32
    %c0_22 = arith.constant 0 : index
    %37 = arith.index_cast %36 : i32 to index
    %c0_23 = arith.constant 0 : index
    %38 = vector.load %arg6[%c0_22, %37, %c0_23] : memref<3x122x126xf32, #tpu.memory_space<vmem>>, vector<1x32x126xf32>
    %39 = vector.shape_cast %38 : vector<1x32x126xf32> to vector<32x126xf32>
    %c0_i32_24 = arith.constant 0 : i32
    %40 = arith.addi %4, %c0_i32_24 : i32
    %c2_i32_25 = arith.constant 2 : i32
    %41 = arith.addi %40, %c2_i32_25 : i32
    %c1_26 = arith.constant 1 : index
    %42 = arith.index_cast %41 : i32 to index
    %c0_27 = arith.constant 0 : index
    %43 = vector.load %arg6[%c1_26, %42, %c0_27] : memref<3x122x126xf32, #tpu.memory_space<vmem>>, vector<1x32x126xf32>
    %44 = vector.shape_cast %43 : vector<1x32x126xf32> to vector<32x126xf32>
    %c0_i32_28 = arith.constant 0 : i32
    %45 = arith.addi %4, %c0_i32_28 : i32
    %c2_i32_29 = arith.constant 2 : i32
    %46 = arith.addi %45, %c2_i32_29 : i32
    %c2_30 = arith.constant 2 : index
    %47 = arith.index_cast %46 : i32 to index
    %c0_31 = arith.constant 0 : index
    %48 = vector.load %arg6[%c2_30, %47, %c0_31] : memref<3x122x126xf32, #tpu.memory_space<vmem>>, vector<1x32x126xf32>
    %49 = vector.shape_cast %48 : vector<1x32x126xf32> to vector<32x126xf32>
    %c0_32 = arith.constant 0 : index
    %50 = memref.load %arg3[%c0_32] : memref<72xf32, #tpu.memory_space<smem>>
    %51 = vector.broadcast %50 : f32 to vector<32x126xf32>
    %52 = arith.mulf %9, %51 : vector<32x126xf32>
    %c1_33 = arith.constant 1 : index
    %53 = memref.load %arg3[%c1_33] : memref<72xf32, #tpu.memory_space<smem>>
    %54 = vector.broadcast %53 : f32 to vector<32x126xf32>
    %55 = arith.mulf %14, %54 : vector<32x126xf32>
    %56 = arith.addf %52, %55 : vector<32x126xf32>
    %c2_34 = arith.constant 2 : index
    %57 = memref.load %arg3[%c2_34] : memref<72xf32, #tpu.memory_space<smem>>
    %58 = vector.broadcast %57 : f32 to vector<32x126xf32>
    %59 = arith.mulf %19, %58 : vector<32x126xf32>
    %60 = arith.addf %56, %59 : vector<32x126xf32>
    %c3 = arith.constant 3 : index
    %61 = memref.load %arg3[%c3] : memref<72xf32, #tpu.memory_space<smem>>
    %62 = vector.broadcast %61 : f32 to vector<32x126xf32>
    %63 = arith.mulf %24, %62 : vector<32x126xf32>
    %64 = arith.addf %60, %63 : vector<32x126xf32>
    %c4 = arith.constant 4 : index
    %65 = memref.load %arg3[%c4] : memref<72xf32, #tpu.memory_space<smem>>
    %66 = vector.broadcast %65 : f32 to vector<32x126xf32>
    %67 = arith.mulf %29, %66 : vector<32x126xf32>
    %68 = arith.addf %64, %67 : vector<32x126xf32>
    %c5 = arith.constant 5 : index
    %69 = memref.load %arg3[%c5] : memref<72xf32, #tpu.memory_space<smem>>
    %70 = vector.broadcast %69 : f32 to vector<32x126xf32>
    %71 = arith.mulf %34, %70 : vector<32x126xf32>
    %72 = arith.addf %68, %71 : vector<32x126xf32>
    %c6 = arith.constant 6 : index
    %73 = memref.load %arg3[%c6] : memref<72xf32, #tpu.memory_space<smem>>
    %74 = vector.broadcast %73 : f32 to vector<32x126xf32>
    %75 = arith.mulf %39, %74 : vector<32x126xf32>
    %76 = arith.addf %72, %75 : vector<32x126xf32>
    %c7 = arith.constant 7 : index
    %77 = memref.load %arg3[%c7] : memref<72xf32, #tpu.memory_space<smem>>
    %78 = vector.broadcast %77 : f32 to vector<32x126xf32>
    %79 = arith.mulf %44, %78 : vector<32x126xf32>
    %80 = arith.addf %76, %79 : vector<32x126xf32>
    %c8 = arith.constant 8 : index
    %81 = memref.load %arg3[%c8] : memref<72xf32, #tpu.memory_space<smem>>
    %82 = vector.broadcast %81 : f32 to vector<32x126xf32>
    %83 = arith.mulf %49, %82 : vector<32x126xf32>
    %84 = arith.addf %80, %83 : vector<32x126xf32>
    %c0_35 = arith.constant 0 : index
    %85 = memref.load %arg4[%c0_35] : memref<8xf32, #tpu.memory_space<smem>>
    %86 = vector.broadcast %85 : f32 to vector<32x126xf32>
    %87 = arith.addf %84, %86 : vector<32x126xf32>
    %c0_36 = arith.constant 0 : index
    %c0_37 = arith.constant 0 : index
    %c0_38 = arith.constant 0 : index
    %c0_39 = arith.constant 0 : index
    %88 = vector.load %arg5[%c0_36, %c0_37, %c0_38, %c0_39] : memref<1x8x40x126xf32, #tpu.memory_space<vmem>>, vector<1x1x32x126xf32>
    %89 = vector.shape_cast %88 : vector<1x1x32x126xf32> to vector<32x126xf32>
    %90 = vector.shape_cast %87 : vector<32x126xf32> to vector<1x1x32x126xf32>
    tpu.vector_store %arg5[%c0_36, %c0_37, %c0_38, %c0_39], %90 {strides = array<i32>} : memref<1x8x40x126xf32, #tpu.memory_space<vmem>>, vector<1x1x32x126xf32>,
    %c9 = arith.constant 9 : index
    %91 = memref.load %arg3[%c9] : memref<72xf32, #tpu.memory_space<smem>>
    %92 = vector.broadcast %91 : f32 to vector<32x126xf32>
    %93 = arith.mulf %9, %92 : vector<32x126xf32>
    %c10 = arith.constant 10 : index
    %94 = memref.load %arg3[%c10] : memref<72xf32, #tpu.memory_space<smem>>
    %95 = vector.broadcast %94 : f32 to vector<32x126xf32>
    %96 = arith.mulf %14, %95 : vector<32x126xf32>
    %97 = arith.addf %93, %96 : vector<32x126xf32>
    %c11 = arith.constant 11 : index
    %98 = memref.load %arg3[%c11] : memref<72xf32, #tpu.memory_space<smem>>
    %99 = vector.broadcast %98 : f32 to vector<32x126xf32>
    %100 = arith.mulf %19, %99 : vector<32x126xf32>
    %101 = arith.addf %97, %100 : vector<32x126xf32>
    %c12 = arith.constant 12 : index
    %102 = memref.load %arg3[%c12] : memref<72xf32, #tpu.memory_space<smem>>
    %103 = vector.broadcast %102 : f32 to vector<32x126xf32>
    %104 = arith.mulf %24, %103 : vector<32x126xf32>
    %105 = arith.addf %101, %104 : vector<32x126xf32>
    %c13 = arith.constant 13 : index
    %106 = memref.load %arg3[%c13] : memref<72xf32, #tpu.memory_space<smem>>
    %107 = vector.broadcast %106 : f32 to vector<32x126xf32>
    %108 = arith.mulf %29, %107 : vector<32x126xf32>
    %109 = arith.addf %105, %108 : vector<32x126xf32>
    %c14 = arith.constant 14 : index
    %110 = memref.load %arg3[%c14] : memref<72xf32, #tpu.memory_space<smem>>
    %111 = vector.broadcast %110 : f32 to vector<32x126xf32>
    %112 = arith.mulf %34, %111 : vector<32x126xf32>
    %113 = arith.addf %109, %112 : vector<32x126xf32>
    %c15 = arith.constant 15 : index
    %114 = memref.load %arg3[%c15] : memref<72xf32, #tpu.memory_space<smem>>
    %115 = vector.broadcast %114 : f32 to vector<32x126xf32>
    %116 = arith.mulf %39, %115 : vector<32x126xf32>
    %117 = arith.addf %113, %116 : vector<32x126xf32>
    %c16 = arith.constant 16 : index
    %118 = memref.load %arg3[%c16] : memref<72xf32, #tpu.memory_space<smem>>
    %119 = vector.broadcast %118 : f32 to vector<32x126xf32>
    %120 = arith.mulf %44, %119 : vector<32x126xf32>
    %121 = arith.addf %117, %120 : vector<32x126xf32>
    %c17 = arith.constant 17 : index
    %122 = memref.load %arg3[%c17] : memref<72xf32, #tpu.memory_space<smem>>
    %123 = vector.broadcast %122 : f32 to vector<32x126xf32>
    %124 = arith.mulf %49, %123 : vector<32x126xf32>
    %125 = arith.addf %121, %124 : vector<32x126xf32>
    %c1_40 = arith.constant 1 : index
    %126 = memref.load %arg4[%c1_40] : memref<8xf32, #tpu.memory_space<smem>>
    %127 = vector.broadcast %126 : f32 to vector<32x126xf32>
    %128 = arith.addf %125, %127 : vector<32x126xf32>
    %c0_41 = arith.constant 0 : index
    %c1_42 = arith.constant 1 : index
    %c0_43 = arith.constant 0 : index
    %c0_44 = arith.constant 0 : index
    %129 = vector.load %arg5[%c0_41, %c1_42, %c0_43, %c0_44] : memref<1x8x40x126xf32, #tpu.memory_space<vmem>>, vector<1x1x32x126xf32>
    %130 = vector.shape_cast %129 : vector<1x1x32x126xf32> to vector<32x126xf32>
    %131 = vector.shape_cast %128 : vector<32x126xf32> to vector<1x1x32x126xf32>
    tpu.vector_store %arg5[%c0_41, %c1_42, %c0_43, %c0_44], %131 {strides = array<i32>} : memref<1x8x40x126xf32, #tpu.memory_space<vmem>>, vector<1x1x32x126xf32>,
    %c18 = arith.constant 18 : index
    %132 = memref.load %arg3[%c18] : memref<72xf32, #tpu.memory_space<smem>>
    %133 = vector.broadcast %132 : f32 to vector<32x126xf32>
    %134 = arith.mulf %9, %133 : vector<32x126xf32>
    %c19 = arith.constant 19 : index
    %135 = memref.load %arg3[%c19] : memref<72xf32, #tpu.memory_space<smem>>
    %136 = vector.broadcast %135 : f32 to vector<32x126xf32>
    %137 = arith.mulf %14, %136 : vector<32x126xf32>
    %138 = arith.addf %134, %137 : vector<32x126xf32>
    %c20 = arith.constant 20 : index
    %139 = memref.load %arg3[%c20] : memref<72xf32, #tpu.memory_space<smem>>
    %140 = vector.broadcast %139 : f32 to vector<32x126xf32>
    %141 = arith.mulf %19, %140 : vector<32x126xf32>
    %142 = arith.addf %138, %141 : vector<32x126xf32>
    %c21 = arith.constant 21 : index
    %143 = memref.load %arg3[%c21] : memref<72xf32, #tpu.memory_space<smem>>
    %144 = vector.broadcast %143 : f32 to vector<32x126xf32>
    %145 = arith.mulf %24, %144 : vector<32x126xf32>
    %146 = arith.addf %142, %145 : vector<32x126xf32>
    %c22 = arith.constant 22 : index
    %147 = memref.load %arg3[%c22] : memref<72xf32, #tpu.memory_space<smem>>
    %148 = vector.broadcast %147 : f32 to vector<32x126xf32>
    %149 = arith.mulf %29, %148 : vector<32x126xf32>
    %150 = arith.addf %146, %149 : vector<32x126xf32>
    %c23 = arith.constant 23 : index
    %151 = memref.load %arg3[%c23] : memref<72xf32, #tpu.memory_space<smem>>
    %152 = vector.broadcast %151 : f32 to vector<32x126xf32>
    %153 = arith.mulf %34, %152 : vector<32x126xf32>
    %154 = arith.addf %150, %153 : vector<32x126xf32>
    %c24 = arith.constant 24 : index
    %155 = memref.load %arg3[%c24] : memref<72xf32, #tpu.memory_space<smem>>
    %156 = vector.broadcast %155 : f32 to vector<32x126xf32>
    %157 = arith.mulf %39, %156 : vector<32x126xf32>
    %158 = arith.addf %154, %157 : vector<32x126xf32>
    %c25 = arith.constant 25 : index
    %159 = memref.load %arg3[%c25] : memref<72xf32, #tpu.memory_space<smem>>
    %160 = vector.broadcast %159 : f32 to vector<32x126xf32>
    %161 = arith.mulf %44, %160 : vector<32x126xf32>
    %162 = arith.addf %158, %161 : vector<32x126xf32>
    %c26 = arith.constant 26 : index
    %163 = memref.load %arg3[%c26] : memref<72xf32, #tpu.memory_space<smem>>
    %164 = vector.broadcast %163 : f32 to vector<32x126xf32>
    %165 = arith.mulf %49, %164 : vector<32x126xf32>
    %166 = arith.addf %162, %165 : vector<32x126xf32>
    %c2_45 = arith.constant 2 : index
    %167 = memref.load %arg4[%c2_45] : memref<8xf32, #tpu.memory_space<smem>>
    %168 = vector.broadcast %167 : f32 to vector<32x126xf32>
    %169 = arith.addf %166, %168 : vector<32x126xf32>
    %c0_46 = arith.constant 0 : index
    %c2_47 = arith.constant 2 : index
    %c0_48 = arith.constant 0 : index
    %c0_49 = arith.constant 0 : index
    %170 = vector.load %arg5[%c0_46, %c2_47, %c0_48, %c0_49] : memref<1x8x40x126xf32, #tpu.memory_space<vmem>>, vector<1x1x32x126xf32>
    %171 = vector.shape_cast %170 : vector<1x1x32x126xf32> to vector<32x126xf32>
    %172 = vector.shape_cast %169 : vector<32x126xf32> to vector<1x1x32x126xf32>
    tpu.vector_store %arg5[%c0_46, %c2_47, %c0_48, %c0_49], %172 {strides = array<i32>} : memref<1x8x40x126xf32, #tpu.memory_space<vmem>>, vector<1x1x32x126xf32>,
    %c27 = arith.constant 27 : index
    %173 = memref.load %arg3[%c27] : memref<72xf32, #tpu.memory_space<smem>>
    %174 = vector.broadcast %173 : f32 to vector<32x126xf32>
    %175 = arith.mulf %9, %174 : vector<32x126xf32>
    %c28 = arith.constant 28 : index
    %176 = memref.load %arg3[%c28] : memref<72xf32, #tpu.memory_space<smem>>
    %177 = vector.broadcast %176 : f32 to vector<32x126xf32>
    %178 = arith.mulf %14, %177 : vector<32x126xf32>
    %179 = arith.addf %175, %178 : vector<32x126xf32>
    %c29 = arith.constant 29 : index
    %180 = memref.load %arg3[%c29] : memref<72xf32, #tpu.memory_space<smem>>
    %181 = vector.broadcast %180 : f32 to vector<32x126xf32>
    %182 = arith.mulf %19, %181 : vector<32x126xf32>
    %183 = arith.addf %179, %182 : vector<32x126xf32>
    %c30 = arith.constant 30 : index
    %184 = memref.load %arg3[%c30] : memref<72xf32, #tpu.memory_space<smem>>
    %185 = vector.broadcast %184 : f32 to vector<32x126xf32>
    %186 = arith.mulf %24, %185 : vector<32x126xf32>
    %187 = arith.addf %183, %186 : vector<32x126xf32>
    %c31 = arith.constant 31 : index
    %188 = memref.load %arg3[%c31] : memref<72xf32, #tpu.memory_space<smem>>
    %189 = vector.broadcast %188 : f32 to vector<32x126xf32>
    %190 = arith.mulf %29, %189 : vector<32x126xf32>
    %191 = arith.addf %187, %190 : vector<32x126xf32>
    %c32 = arith.constant 32 : index
    %192 = memref.load %arg3[%c32] : memref<72xf32, #tpu.memory_space<smem>>
    %193 = vector.broadcast %192 : f32 to vector<32x126xf32>
    %194 = arith.mulf %34, %193 : vector<32x126xf32>
    %195 = arith.addf %191, %194 : vector<32x126xf32>
    %c33 = arith.constant 33 : index
    %196 = memref.load %arg3[%c33] : memref<72xf32, #tpu.memory_space<smem>>
    %197 = vector.broadcast %196 : f32 to vector<32x126xf32>
    %198 = arith.mulf %39, %197 : vector<32x126xf32>
    %199 = arith.addf %195, %198 : vector<32x126xf32>
    %c34 = arith.constant 34 : index
    %200 = memref.load %arg3[%c34] : memref<72xf32, #tpu.memory_space<smem>>
    %201 = vector.broadcast %200 : f32 to vector<32x126xf32>
    %202 = arith.mulf %44, %201 : vector<32x126xf32>
    %203 = arith.addf %199, %202 : vector<32x126xf32>
    %c35 = arith.constant 35 : index
    %204 = memref.load %arg3[%c35] : memref<72xf32, #tpu.memory_space<smem>>
    %205 = vector.broadcast %204 : f32 to vector<32x126xf32>
    %206 = arith.mulf %49, %205 : vector<32x126xf32>
    %207 = arith.addf %203, %206 : vector<32x126xf32>
    %c3_50 = arith.constant 3 : index
    %208 = memref.load %arg4[%c3_50] : memref<8xf32, #tpu.memory_space<smem>>
    %209 = vector.broadcast %208 : f32 to vector<32x126xf32>
    %210 = arith.addf %207, %209 : vector<32x126xf32>
    %c0_51 = arith.constant 0 : index
    %c3_52 = arith.constant 3 : index
    %c0_53 = arith.constant 0 : index
    %c0_54 = arith.constant 0 : index
    %211 = vector.load %arg5[%c0_51, %c3_52, %c0_53, %c0_54] : memref<1x8x40x126xf32, #tpu.memory_space<vmem>>, vector<1x1x32x126xf32>
    %212 = vector.shape_cast %211 : vector<1x1x32x126xf32> to vector<32x126xf32>
    %213 = vector.shape_cast %210 : vector<32x126xf32> to vector<1x1x32x126xf32>
    tpu.vector_store %arg5[%c0_51, %c3_52, %c0_53, %c0_54], %213 {strides = array<i32>} : memref<1x8x40x126xf32, #tpu.memory_space<vmem>>, vector<1x1x32x126xf32>,
    %c36 = arith.constant 36 : index
    %214 = memref.load %arg3[%c36] : memref<72xf32, #tpu.memory_space<smem>>
    %215 = vector.broadcast %214 : f32 to vector<32x126xf32>
    %216 = arith.mulf %9, %215 : vector<32x126xf32>
    %c37 = arith.constant 37 : index
    %217 = memref.load %arg3[%c37] : memref<72xf32, #tpu.memory_space<smem>>
    %218 = vector.broadcast %217 : f32 to vector<32x126xf32>
    %219 = arith.mulf %14, %218 : vector<32x126xf32>
    %220 = arith.addf %216, %219 : vector<32x126xf32>
    %c38 = arith.constant 38 : index
    %221 = memref.load %arg3[%c38] : memref<72xf32, #tpu.memory_space<smem>>
    %222 = vector.broadcast %221 : f32 to vector<32x126xf32>
    %223 = arith.mulf %19, %222 : vector<32x126xf32>
    %224 = arith.addf %220, %223 : vector<32x126xf32>
    %c39 = arith.constant 39 : index
    %225 = memref.load %arg3[%c39] : memref<72xf32, #tpu.memory_space<smem>>
    %226 = vector.broadcast %225 : f32 to vector<32x126xf32>
    %227 = arith.mulf %24, %226 : vector<32x126xf32>
    %228 = arith.addf %224, %227 : vector<32x126xf32>
    %c40 = arith.constant 40 : index
    %229 = memref.load %arg3[%c40] : memref<72xf32, #tpu.memory_space<smem>>
    %230 = vector.broadcast %229 : f32 to vector<32x126xf32>
    %231 = arith.mulf %29, %230 : vector<32x126xf32>
    %232 = arith.addf %228, %231 : vector<32x126xf32>
    %c41 = arith.constant 41 : index
    %233 = memref.load %arg3[%c41] : memref<72xf32, #tpu.memory_space<smem>>
    %234 = vector.broadcast %233 : f32 to vector<32x126xf32>
    %235 = arith.mulf %34, %234 : vector<32x126xf32>
    %236 = arith.addf %232, %235 : vector<32x126xf32>
    %c42 = arith.constant 42 : index
    %237 = memref.load %arg3[%c42] : memref<72xf32, #tpu.memory_space<smem>>
    %238 = vector.broadcast %237 : f32 to vector<32x126xf32>
    %239 = arith.mulf %39, %238 : vector<32x126xf32>
    %240 = arith.addf %236, %239 : vector<32x126xf32>
    %c43 = arith.constant 43 : index
    %241 = memref.load %arg3[%c43] : memref<72xf32, #tpu.memory_space<smem>>
    %242 = vector.broadcast %241 : f32 to vector<32x126xf32>
    %243 = arith.mulf %44, %242 : vector<32x126xf32>
    %244 = arith.addf %240, %243 : vector<32x126xf32>
    %c44 = arith.constant 44 : index
    %245 = memref.load %arg3[%c44] : memref<72xf32, #tpu.memory_space<smem>>
    %246 = vector.broadcast %245 : f32 to vector<32x126xf32>
    %247 = arith.mulf %49, %246 : vector<32x126xf32>
    %248 = arith.addf %244, %247 : vector<32x126xf32>
    %c4_55 = arith.constant 4 : index
    %249 = memref.load %arg4[%c4_55] : memref<8xf32, #tpu.memory_space<smem>>
    %250 = vector.broadcast %249 : f32 to vector<32x126xf32>
    %251 = arith.addf %248, %250 : vector<32x126xf32>
    %c0_56 = arith.constant 0 : index
    %c4_57 = arith.constant 4 : index
    %c0_58 = arith.constant 0 : index
    %c0_59 = arith.constant 0 : index
    %252 = vector.load %arg5[%c0_56, %c4_57, %c0_58, %c0_59] : memref<1x8x40x126xf32, #tpu.memory_space<vmem>>, vector<1x1x32x126xf32>
    %253 = vector.shape_cast %252 : vector<1x1x32x126xf32> to vector<32x126xf32>
    %254 = vector.shape_cast %251 : vector<32x126xf32> to vector<1x1x32x126xf32>
    tpu.vector_store %arg5[%c0_56, %c4_57, %c0_58, %c0_59], %254 {strides = array<i32>} : memref<1x8x40x126xf32, #tpu.memory_space<vmem>>, vector<1x1x32x126xf32>,
    %c45 = arith.constant 45 : index
    %255 = memref.load %arg3[%c45] : memref<72xf32, #tpu.memory_space<smem>>
    %256 = vector.broadcast %255 : f32 to vector<32x126xf32>
    %257 = arith.mulf %9, %256 : vector<32x126xf32>
    %c46 = arith.constant 46 : index
    %258 = memref.load %arg3[%c46] : memref<72xf32, #tpu.memory_space<smem>>
    %259 = vector.broadcast %258 : f32 to vector<32x126xf32>
    %260 = arith.mulf %14, %259 : vector<32x126xf32>
    %261 = arith.addf %257, %260 : vector<32x126xf32>
    %c47 = arith.constant 47 : index
    %262 = memref.load %arg3[%c47] : memref<72xf32, #tpu.memory_space<smem>>
    %263 = vector.broadcast %262 : f32 to vector<32x126xf32>
    %264 = arith.mulf %19, %263 : vector<32x126xf32>
    %265 = arith.addf %261, %264 : vector<32x126xf32>
    %c48 = arith.constant 48 : index
    %266 = memref.load %arg3[%c48] : memref<72xf32, #tpu.memory_space<smem>>
    %267 = vector.broadcast %266 : f32 to vector<32x126xf32>
    %268 = arith.mulf %24, %267 : vector<32x126xf32>
    %269 = arith.addf %265, %268 : vector<32x126xf32>
    %c49 = arith.constant 49 : index
    %270 = memref.load %arg3[%c49] : memref<72xf32, #tpu.memory_space<smem>>
    %271 = vector.broadcast %270 : f32 to vector<32x126xf32>
    %272 = arith.mulf %29, %271 : vector<32x126xf32>
    %273 = arith.addf %269, %272 : vector<32x126xf32>
    %c50 = arith.constant 50 : index
    %274 = memref.load %arg3[%c50] : memref<72xf32, #tpu.memory_space<smem>>
    %275 = vector.broadcast %274 : f32 to vector<32x126xf32>
    %276 = arith.mulf %34, %275 : vector<32x126xf32>
    %277 = arith.addf %273, %276 : vector<32x126xf32>
    %c51 = arith.constant 51 : index
    %278 = memref.load %arg3[%c51] : memref<72xf32, #tpu.memory_space<smem>>
    %279 = vector.broadcast %278 : f32 to vector<32x126xf32>
    %280 = arith.mulf %39, %279 : vector<32x126xf32>
    %281 = arith.addf %277, %280 : vector<32x126xf32>
    %c52 = arith.constant 52 : index
    %282 = memref.load %arg3[%c52] : memref<72xf32, #tpu.memory_space<smem>>
    %283 = vector.broadcast %282 : f32 to vector<32x126xf32>
    %284 = arith.mulf %44, %283 : vector<32x126xf32>
    %285 = arith.addf %281, %284 : vector<32x126xf32>
    %c53 = arith.constant 53 : index
    %286 = memref.load %arg3[%c53] : memref<72xf32, #tpu.memory_space<smem>>
    %287 = vector.broadcast %286 : f32 to vector<32x126xf32>
    %288 = arith.mulf %49, %287 : vector<32x126xf32>
    %289 = arith.addf %285, %288 : vector<32x126xf32>
    %c5_60 = arith.constant 5 : index
    %290 = memref.load %arg4[%c5_60] : memref<8xf32, #tpu.memory_space<smem>>
    %291 = vector.broadcast %290 : f32 to vector<32x126xf32>
    %292 = arith.addf %289, %291 : vector<32x126xf32>
    %c0_61 = arith.constant 0 : index
    %c5_62 = arith.constant 5 : index
    %c0_63 = arith.constant 0 : index
    %c0_64 = arith.constant 0 : index
    %293 = vector.load %arg5[%c0_61, %c5_62, %c0_63, %c0_64] : memref<1x8x40x126xf32, #tpu.memory_space<vmem>>, vector<1x1x32x126xf32>
    %294 = vector.shape_cast %293 : vector<1x1x32x126xf32> to vector<32x126xf32>
    %295 = vector.shape_cast %292 : vector<32x126xf32> to vector<1x1x32x126xf32>
    tpu.vector_store %arg5[%c0_61, %c5_62, %c0_63, %c0_64], %295 {strides = array<i32>} : memref<1x8x40x126xf32, #tpu.memory_space<vmem>>, vector<1x1x32x126xf32>,
    %c54 = arith.constant 54 : index
    %296 = memref.load %arg3[%c54] : memref<72xf32, #tpu.memory_space<smem>>
    %297 = vector.broadcast %296 : f32 to vector<32x126xf32>
    %298 = arith.mulf %9, %297 : vector<32x126xf32>
    %c55 = arith.constant 55 : index
    %299 = memref.load %arg3[%c55] : memref<72xf32, #tpu.memory_space<smem>>
    %300 = vector.broadcast %299 : f32 to vector<32x126xf32>
    %301 = arith.mulf %14, %300 : vector<32x126xf32>
    %302 = arith.addf %298, %301 : vector<32x126xf32>
    %c56 = arith.constant 56 : index
    %303 = memref.load %arg3[%c56] : memref<72xf32, #tpu.memory_space<smem>>
    %304 = vector.broadcast %303 : f32 to vector<32x126xf32>
    %305 = arith.mulf %19, %304 : vector<32x126xf32>
    %306 = arith.addf %302, %305 : vector<32x126xf32>
    %c57 = arith.constant 57 : index
    %307 = memref.load %arg3[%c57] : memref<72xf32, #tpu.memory_space<smem>>
    %308 = vector.broadcast %307 : f32 to vector<32x126xf32>
    %309 = arith.mulf %24, %308 : vector<32x126xf32>
    %310 = arith.addf %306, %309 : vector<32x126xf32>
    %c58 = arith.constant 58 : index
    %311 = memref.load %arg3[%c58] : memref<72xf32, #tpu.memory_space<smem>>
    %312 = vector.broadcast %311 : f32 to vector<32x126xf32>
    %313 = arith.mulf %29, %312 : vector<32x126xf32>
    %314 = arith.addf %310, %313 : vector<32x126xf32>
    %c59 = arith.constant 59 : index
    %315 = memref.load %arg3[%c59] : memref<72xf32, #tpu.memory_space<smem>>
    %316 = vector.broadcast %315 : f32 to vector<32x126xf32>
    %317 = arith.mulf %34, %316 : vector<32x126xf32>
    %318 = arith.addf %314, %317 : vector<32x126xf32>
    %c60 = arith.constant 60 : index
    %319 = memref.load %arg3[%c60] : memref<72xf32, #tpu.memory_space<smem>>
    %320 = vector.broadcast %319 : f32 to vector<32x126xf32>
    %321 = arith.mulf %39, %320 : vector<32x126xf32>
    %322 = arith.addf %318, %321 : vector<32x126xf32>
    %c61 = arith.constant 61 : index
    %323 = memref.load %arg3[%c61] : memref<72xf32, #tpu.memory_space<smem>>
    %324 = vector.broadcast %323 : f32 to vector<32x126xf32>
    %325 = arith.mulf %44, %324 : vector<32x126xf32>
    %326 = arith.addf %322, %325 : vector<32x126xf32>
    %c62 = arith.constant 62 : index
    %327 = memref.load %arg3[%c62] : memref<72xf32, #tpu.memory_space<smem>>
    %328 = vector.broadcast %327 : f32 to vector<32x126xf32>
    %329 = arith.mulf %49, %328 : vector<32x126xf32>
    %330 = arith.addf %326, %329 : vector<32x126xf32>
    %c6_65 = arith.constant 6 : index
    %331 = memref.load %arg4[%c6_65] : memref<8xf32, #tpu.memory_space<smem>>
    %332 = vector.broadcast %331 : f32 to vector<32x126xf32>
    %333 = arith.addf %330, %332 : vector<32x126xf32>
    %c0_66 = arith.constant 0 : index
    %c6_67 = arith.constant 6 : index
    %c0_68 = arith.constant 0 : index
    %c0_69 = arith.constant 0 : index
    %334 = vector.load %arg5[%c0_66, %c6_67, %c0_68, %c0_69] : memref<1x8x40x126xf32, #tpu.memory_space<vmem>>, vector<1x1x32x126xf32>
    %335 = vector.shape_cast %334 : vector<1x1x32x126xf32> to vector<32x126xf32>
    %336 = vector.shape_cast %333 : vector<32x126xf32> to vector<1x1x32x126xf32>
    tpu.vector_store %arg5[%c0_66, %c6_67, %c0_68, %c0_69], %336 {strides = array<i32>} : memref<1x8x40x126xf32, #tpu.memory_space<vmem>>, vector<1x1x32x126xf32>,
    %c63 = arith.constant 63 : index
    %337 = memref.load %arg3[%c63] : memref<72xf32, #tpu.memory_space<smem>>
    %338 = vector.broadcast %337 : f32 to vector<32x126xf32>
    %339 = arith.mulf %9, %338 : vector<32x126xf32>
    %c64 = arith.constant 64 : index
    %340 = memref.load %arg3[%c64] : memref<72xf32, #tpu.memory_space<smem>>
    %341 = vector.broadcast %340 : f32 to vector<32x126xf32>
    %342 = arith.mulf %14, %341 : vector<32x126xf32>
    %343 = arith.addf %339, %342 : vector<32x126xf32>
    %c65 = arith.constant 65 : index
    %344 = memref.load %arg3[%c65] : memref<72xf32, #tpu.memory_space<smem>>
    %345 = vector.broadcast %344 : f32 to vector<32x126xf32>
    %346 = arith.mulf %19, %345 : vector<32x126xf32>
    %347 = arith.addf %343, %346 : vector<32x126xf32>
    %c66 = arith.constant 66 : index
    %348 = memref.load %arg3[%c66] : memref<72xf32, #tpu.memory_space<smem>>
    %349 = vector.broadcast %348 : f32 to vector<32x126xf32>
    %350 = arith.mulf %24, %349 : vector<32x126xf32>
    %351 = arith.addf %347, %350 : vector<32x126xf32>
    %c67 = arith.constant 67 : index
    %352 = memref.load %arg3[%c67] : memref<72xf32, #tpu.memory_space<smem>>
    %353 = vector.broadcast %352 : f32 to vector<32x126xf32>
    %354 = arith.mulf %29, %353 : vector<32x126xf32>
    %355 = arith.addf %351, %354 : vector<32x126xf32>
    %c68 = arith.constant 68 : index
    %356 = memref.load %arg3[%c68] : memref<72xf32, #tpu.memory_space<smem>>
    %357 = vector.broadcast %356 : f32 to vector<32x126xf32>
    %358 = arith.mulf %34, %357 : vector<32x126xf32>
    %359 = arith.addf %355, %358 : vector<32x126xf32>
    %c69 = arith.constant 69 : index
    %360 = memref.load %arg3[%c69] : memref<72xf32, #tpu.memory_space<smem>>
    %361 = vector.broadcast %360 : f32 to vector<32x126xf32>
    %362 = arith.mulf %39, %361 : vector<32x126xf32>
    %363 = arith.addf %359, %362 : vector<32x126xf32>
    %c70 = arith.constant 70 : index
    %364 = memref.load %arg3[%c70] : memref<72xf32, #tpu.memory_space<smem>>
    %365 = vector.broadcast %364 : f32 to vector<32x126xf32>
    %366 = arith.mulf %44, %365 : vector<32x126xf32>
    %367 = arith.addf %363, %366 : vector<32x126xf32>
    %c71 = arith.constant 71 : index
    %368 = memref.load %arg3[%c71] : memref<72xf32, #tpu.memory_space<smem>>
    %369 = vector.broadcast %368 : f32 to vector<32x126xf32>
    %370 = arith.mulf %49, %369 : vector<32x126xf32>
    %371 = arith.addf %367, %370 : vector<32x126xf32>
    %c7_70 = arith.constant 7 : index
    %372 = memref.load %arg4[%c7_70] : memref<8xf32, #tpu.memory_space<smem>>
    %373 = vector.broadcast %372 : f32 to vector<32x126xf32>
    %374 = arith.addf %371, %373 : vector<32x126xf32>
    %c0_71 = arith.constant 0 : index
    %c7_72 = arith.constant 7 : index
    %c0_73 = arith.constant 0 : index
    %c0_74 = arith.constant 0 : index
    %375 = vector.load %arg5[%c0_71, %c7_72, %c0_73, %c0_74] : memref<1x8x40x126xf32, #tpu.memory_space<vmem>>, vector<1x1x32x126xf32>
    %376 = vector.shape_cast %375 : vector<1x1x32x126xf32> to vector<32x126xf32>
    %377 = vector.shape_cast %374 : vector<32x126xf32> to vector<1x1x32x126xf32>
    tpu.vector_store %arg5[%c0_71, %c7_72, %c0_73, %c0_74], %377 {strides = array<i32>} : memref<1x8x40x126xf32, #tpu.memory_space<vmem>>, vector<1x1x32x126xf32>,
    %c32_i32 = arith.constant 32 : i32
    %378 = arith.addi %4, %c32_i32 : i32
    %c0_i32_75 = arith.constant 0 : i32
    %379 = arith.addi %378, %c0_i32_75 : i32
    %c0_76 = arith.constant 0 : index
    %380 = arith.index_cast %379 : i32 to index
    %c0_77 = arith.constant 0 : index
    %381 = vector.load %arg6[%c0_76, %380, %c0_77] : memref<3x122x126xf32, #tpu.memory_space<vmem>>, vector<1x8x126xf32>
    %382 = vector.shape_cast %381 : vector<1x8x126xf32> to vector<8x126xf32>
    %c32_i32_78 = arith.constant 32 : i32
    %383 = arith.addi %4, %c32_i32_78 : i32
    %c0_i32_79 = arith.constant 0 : i32
    %384 = arith.addi %383, %c0_i32_79 : i32
    %c1_80 = arith.constant 1 : index
    %385 = arith.index_cast %384 : i32 to index
    %c0_81 = arith.constant 0 : index
    %386 = vector.load %arg6[%c1_80, %385, %c0_81] : memref<3x122x126xf32, #tpu.memory_space<vmem>>, vector<1x8x126xf32>
    %387 = vector.shape_cast %386 : vector<1x8x126xf32> to vector<8x126xf32>
    %c32_i32_82 = arith.constant 32 : i32
    %388 = arith.addi %4, %c32_i32_82 : i32
    %c0_i32_83 = arith.constant 0 : i32
    %389 = arith.addi %388, %c0_i32_83 : i32
    %c2_84 = arith.constant 2 : index
    %390 = arith.index_cast %389 : i32 to index
    %c0_85 = arith.constant 0 : index
    %391 = vector.load %arg6[%c2_84, %390, %c0_85] : memref<3x122x126xf32, #tpu.memory_space<vmem>>, vector<1x8x126xf32>
    %392 = vector.shape_cast %391 : vector<1x8x126xf32> to vector<8x126xf32>
    %c32_i32_86 = arith.constant 32 : i32
    %393 = arith.addi %4, %c32_i32_86 : i32
    %c1_i32_87 = arith.constant 1 : i32
    %394 = arith.addi %393, %c1_i32_87 : i32
    %c0_88 = arith.constant 0 : index
    %395 = arith.index_cast %394 : i32 to index
    %c0_89 = arith.constant 0 : index
    %396 = vector.load %arg6[%c0_88, %395, %c0_89] : memref<3x122x126xf32, #tpu.memory_space<vmem>>, vector<1x8x126xf32>
    %397 = vector.shape_cast %396 : vector<1x8x126xf32> to vector<8x126xf32>
    %c32_i32_90 = arith.constant 32 : i32
    %398 = arith.addi %4, %c32_i32_90 : i32
    %c1_i32_91 = arith.constant 1 : i32
    %399 = arith.addi %398, %c1_i32_91 : i32
    %c1_92 = arith.constant 1 : index
    %400 = arith.index_cast %399 : i32 to index
    %c0_93 = arith.constant 0 : index
    %401 = vector.load %arg6[%c1_92, %400, %c0_93] : memref<3x122x126xf32, #tpu.memory_space<vmem>>, vector<1x8x126xf32>
    %402 = vector.shape_cast %401 : vector<1x8x126xf32> to vector<8x126xf32>
    %c32_i32_94 = arith.constant 32 : i32
    %403 = arith.addi %4, %c32_i32_94 : i32
    %c1_i32_95 = arith.constant 1 : i32
    %404 = arith.addi %403, %c1_i32_95 : i32
    %c2_96 = arith.constant 2 : index
    %405 = arith.index_cast %404 : i32 to index
    %c0_97 = arith.constant 0 : index
    %406 = vector.load %arg6[%c2_96, %405, %c0_97] : memref<3x122x126xf32, #tpu.memory_space<vmem>>, vector<1x8x126xf32>
    %407 = vector.shape_cast %406 : vector<1x8x126xf32> to vector<8x126xf32>
    %c32_i32_98 = arith.constant 32 : i32
    %408 = arith.addi %4, %c32_i32_98 : i32
    %c2_i32_99 = arith.constant 2 : i32
    %409 = arith.addi %408, %c2_i32_99 : i32
    %c0_100 = arith.constant 0 : index
    %410 = arith.index_cast %409 : i32 to index
    %c0_101 = arith.constant 0 : index
    %411 = vector.load %arg6[%c0_100, %410, %c0_101] : memref<3x122x126xf32, #tpu.memory_space<vmem>>, vector<1x8x126xf32>
    %412 = vector.shape_cast %411 : vector<1x8x126xf32> to vector<8x126xf32>
    %c32_i32_102 = arith.constant 32 : i32
    %413 = arith.addi %4, %c32_i32_102 : i32
    %c2_i32_103 = arith.constant 2 : i32
    %414 = arith.addi %413, %c2_i32_103 : i32
    %c1_104 = arith.constant 1 : index
    %415 = arith.index_cast %414 : i32 to index
    %c0_105 = arith.constant 0 : index
    %416 = vector.load %arg6[%c1_104, %415, %c0_105] : memref<3x122x126xf32, #tpu.memory_space<vmem>>, vector<1x8x126xf32>
    %417 = vector.shape_cast %416 : vector<1x8x126xf32> to vector<8x126xf32>
    %c32_i32_106 = arith.constant 32 : i32
    %418 = arith.addi %4, %c32_i32_106 : i32
    %c2_i32_107 = arith.constant 2 : i32
    %419 = arith.addi %418, %c2_i32_107 : i32
    %c2_108 = arith.constant 2 : index
    %420 = arith.index_cast %419 : i32 to index
    %c0_109 = arith.constant 0 : index
    %421 = vector.load %arg6[%c2_108, %420, %c0_109] : memref<3x122x126xf32, #tpu.memory_space<vmem>>, vector<1x8x126xf32>
    %422 = vector.shape_cast %421 : vector<1x8x126xf32> to vector<8x126xf32>
    %c0_110 = arith.constant 0 : index
    %423 = memref.load %arg3[%c0_110] : memref<72xf32, #tpu.memory_space<smem>>
    %424 = vector.broadcast %423 : f32 to vector<8x126xf32>
    %425 = arith.mulf %382, %424 : vector<8x126xf32>
    %c1_111 = arith.constant 1 : index
    %426 = memref.load %arg3[%c1_111] : memref<72xf32, #tpu.memory_space<smem>>
    %427 = vector.broadcast %426 : f32 to vector<8x126xf32>
    %428 = arith.mulf %387, %427 : vector<8x126xf32>
    %429 = arith.addf %425, %428 : vector<8x126xf32>
    %c2_112 = arith.constant 2 : index
    %430 = memref.load %arg3[%c2_112] : memref<72xf32, #tpu.memory_space<smem>>
    %431 = vector.broadcast %430 : f32 to vector<8x126xf32>
    %432 = arith.mulf %392, %431 : vector<8x126xf32>
    %433 = arith.addf %429, %432 : vector<8x126xf32>
    %c3_113 = arith.constant 3 : index
    %434 = memref.load %arg3[%c3_113] : memref<72xf32, #tpu.memory_space<smem>>
    %435 = vector.broadcast %434 : f32 to vector<8x126xf32>
    %436 = arith.mulf %397, %435 : vector<8x126xf32>
    %437 = arith.addf %433, %436 : vector<8x126xf32>
    %c4_114 = arith.constant 4 : index
    %438 = memref.load %arg3[%c4_114] : memref<72xf32, #tpu.memory_space<smem>>
    %439 = vector.broadcast %438 : f32 to vector<8x126xf32>
    %440 = arith.mulf %402, %439 : vector<8x126xf32>
    %441 = arith.addf %437, %440 : vector<8x126xf32>
    %c5_115 = arith.constant 5 : index
    %442 = memref.load %arg3[%c5_115] : memref<72xf32, #tpu.memory_space<smem>>
    %443 = vector.broadcast %442 : f32 to vector<8x126xf32>
    %444 = arith.mulf %407, %443 : vector<8x126xf32>
    %445 = arith.addf %441, %444 : vector<8x126xf32>
    %c6_116 = arith.constant 6 : index
    %446 = memref.load %arg3[%c6_116] : memref<72xf32, #tpu.memory_space<smem>>
    %447 = vector.broadcast %446 : f32 to vector<8x126xf32>
    %448 = arith.mulf %412, %447 : vector<8x126xf32>
    %449 = arith.addf %445, %448 : vector<8x126xf32>
    %c7_117 = arith.constant 7 : index
    %450 = memref.load %arg3[%c7_117] : memref<72xf32, #tpu.memory_space<smem>>
    %451 = vector.broadcast %450 : f32 to vector<8x126xf32>
    %452 = arith.mulf %417, %451 : vector<8x126xf32>
    %453 = arith.addf %449, %452 : vector<8x126xf32>
    %c8_118 = arith.constant 8 : index
    %454 = memref.load %arg3[%c8_118] : memref<72xf32, #tpu.memory_space<smem>>
    %455 = vector.broadcast %454 : f32 to vector<8x126xf32>
    %456 = arith.mulf %422, %455 : vector<8x126xf32>
    %457 = arith.addf %453, %456 : vector<8x126xf32>
    %c0_119 = arith.constant 0 : index
    %458 = memref.load %arg4[%c0_119] : memref<8xf32, #tpu.memory_space<smem>>
    %459 = vector.broadcast %458 : f32 to vector<8x126xf32>
    %460 = arith.addf %457, %459 : vector<8x126xf32>
    %c0_120 = arith.constant 0 : index
    %c0_121 = arith.constant 0 : index
    %c32_122 = arith.constant 32 : index
    %c0_123 = arith.constant 0 : index
    %461 = vector.load %arg5[%c0_120, %c0_121, %c32_122, %c0_123] : memref<1x8x40x126xf32, #tpu.memory_space<vmem>>, vector<1x1x8x126xf32>
    %462 = vector.shape_cast %461 : vector<1x1x8x126xf32> to vector<8x126xf32>
    %463 = vector.shape_cast %460 : vector<8x126xf32> to vector<1x1x8x126xf32>
    tpu.vector_store %arg5[%c0_120, %c0_121, %c32_122, %c0_123], %463 {strides = array<i32>} : memref<1x8x40x126xf32, #tpu.memory_space<vmem>>, vector<1x1x8x126xf32>,
    %c9_124 = arith.constant 9 : index
    %464 = memref.load %arg3[%c9_124] : memref<72xf32, #tpu.memory_space<smem>>
    %465 = vector.broadcast %464 : f32 to vector<8x126xf32>
    %466 = arith.mulf %382, %465 : vector<8x126xf32>
    %c10_125 = arith.constant 10 : index
    %467 = memref.load %arg3[%c10_125] : memref<72xf32, #tpu.memory_space<smem>>
    %468 = vector.broadcast %467 : f32 to vector<8x126xf32>
    %469 = arith.mulf %387, %468 : vector<8x126xf32>
    %470 = arith.addf %466, %469 : vector<8x126xf32>
    %c11_126 = arith.constant 11 : index
    %471 = memref.load %arg3[%c11_126] : memref<72xf32, #tpu.memory_space<smem>>
    %472 = vector.broadcast %471 : f32 to vector<8x126xf32>
    %473 = arith.mulf %392, %472 : vector<8x126xf32>
    %474 = arith.addf %470, %473 : vector<8x126xf32>
    %c12_127 = arith.constant 12 : index
    %475 = memref.load %arg3[%c12_127] : memref<72xf32, #tpu.memory_space<smem>>
    %476 = vector.broadcast %475 : f32 to vector<8x126xf32>
    %477 = arith.mulf %397, %476 : vector<8x126xf32>
    %478 = arith.addf %474, %477 : vector<8x126xf32>
    %c13_128 = arith.constant 13 : index
    %479 = memref.load %arg3[%c13_128] : memref<72xf32, #tpu.memory_space<smem>>
    %480 = vector.broadcast %479 : f32 to vector<8x126xf32>
    %481 = arith.mulf %402, %480 : vector<8x126xf32>
    %482 = arith.addf %478, %481 : vector<8x126xf32>
    %c14_129 = arith.constant 14 : index
    %483 = memref.load %arg3[%c14_129] : memref<72xf32, #tpu.memory_space<smem>>
    %484 = vector.broadcast %483 : f32 to vector<8x126xf32>
    %485 = arith.mulf %407, %484 : vector<8x126xf32>
    %486 = arith.addf %482, %485 : vector<8x126xf32>
    %c15_130 = arith.constant 15 : index
    %487 = memref.load %arg3[%c15_130] : memref<72xf32, #tpu.memory_space<smem>>
    %488 = vector.broadcast %487 : f32 to vector<8x126xf32>
    %489 = arith.mulf %412, %488 : vector<8x126xf32>
    %490 = arith.addf %486, %489 : vector<8x126xf32>
    %c16_131 = arith.constant 16 : index
    %491 = memref.load %arg3[%c16_131] : memref<72xf32, #tpu.memory_space<smem>>
    %492 = vector.broadcast %491 : f32 to vector<8x126xf32>
    %493 = arith.mulf %417, %492 : vector<8x126xf32>
    %494 = arith.addf %490, %493 : vector<8x126xf32>
    %c17_132 = arith.constant 17 : index
    %495 = memref.load %arg3[%c17_132] : memref<72xf32, #tpu.memory_space<smem>>
    %496 = vector.broadcast %495 : f32 to vector<8x126xf32>
    %497 = arith.mulf %422, %496 : vector<8x126xf32>
    %498 = arith.addf %494, %497 : vector<8x126xf32>
    %c1_133 = arith.constant 1 : index
    %499 = memref.load %arg4[%c1_133] : memref<8xf32, #tpu.memory_space<smem>>
    %500 = vector.broadcast %499 : f32 to vector<8x126xf32>
    %501 = arith.addf %498, %500 : vector<8x126xf32>
    %c0_134 = arith.constant 0 : index
    %c1_135 = arith.constant 1 : index
    %c32_136 = arith.constant 32 : index
    %c0_137 = arith.constant 0 : index
    %502 = vector.load %arg5[%c0_134, %c1_135, %c32_136, %c0_137] : memref<1x8x40x126xf32, #tpu.memory_space<vmem>>, vector<1x1x8x126xf32>
    %503 = vector.shape_cast %502 : vector<1x1x8x126xf32> to vector<8x126xf32>
    %504 = vector.shape_cast %501 : vector<8x126xf32> to vector<1x1x8x126xf32>
    tpu.vector_store %arg5[%c0_134, %c1_135, %c32_136, %c0_137], %504 {strides = array<i32>} : memref<1x8x40x126xf32, #tpu.memory_space<vmem>>, vector<1x1x8x126xf32>,
    %c18_138 = arith.constant 18 : index
    %505 = memref.load %arg3[%c18_138] : memref<72xf32, #tpu.memory_space<smem>>
    %506 = vector.broadcast %505 : f32 to vector<8x126xf32>
    %507 = arith.mulf %382, %506 : vector<8x126xf32>
    %c19_139 = arith.constant 19 : index
    %508 = memref.load %arg3[%c19_139] : memref<72xf32, #tpu.memory_space<smem>>
    %509 = vector.broadcast %508 : f32 to vector<8x126xf32>
    %510 = arith.mulf %387, %509 : vector<8x126xf32>
    %511 = arith.addf %507, %510 : vector<8x126xf32>
    %c20_140 = arith.constant 20 : index
    %512 = memref.load %arg3[%c20_140] : memref<72xf32, #tpu.memory_space<smem>>
    %513 = vector.broadcast %512 : f32 to vector<8x126xf32>
    %514 = arith.mulf %392, %513 : vector<8x126xf32>
    %515 = arith.addf %511, %514 : vector<8x126xf32>
    %c21_141 = arith.constant 21 : index
    %516 = memref.load %arg3[%c21_141] : memref<72xf32, #tpu.memory_space<smem>>
    %517 = vector.broadcast %516 : f32 to vector<8x126xf32>
    %518 = arith.mulf %397, %517 : vector<8x126xf32>
    %519 = arith.addf %515, %518 : vector<8x126xf32>
    %c22_142 = arith.constant 22 : index
    %520 = memref.load %arg3[%c22_142] : memref<72xf32, #tpu.memory_space<smem>>
    %521 = vector.broadcast %520 : f32 to vector<8x126xf32>
    %522 = arith.mulf %402, %521 : vector<8x126xf32>
    %523 = arith.addf %519, %522 : vector<8x126xf32>
    %c23_143 = arith.constant 23 : index
    %524 = memref.load %arg3[%c23_143] : memref<72xf32, #tpu.memory_space<smem>>
    %525 = vector.broadcast %524 : f32 to vector<8x126xf32>
    %526 = arith.mulf %407, %525 : vector<8x126xf32>
    %527 = arith.addf %523, %526 : vector<8x126xf32>
    %c24_144 = arith.constant 24 : index
    %528 = memref.load %arg3[%c24_144] : memref<72xf32, #tpu.memory_space<smem>>
    %529 = vector.broadcast %528 : f32 to vector<8x126xf32>
    %530 = arith.mulf %412, %529 : vector<8x126xf32>
    %531 = arith.addf %527, %530 : vector<8x126xf32>
    %c25_145 = arith.constant 25 : index
    %532 = memref.load %arg3[%c25_145] : memref<72xf32, #tpu.memory_space<smem>>
    %533 = vector.broadcast %532 : f32 to vector<8x126xf32>
    %534 = arith.mulf %417, %533 : vector<8x126xf32>
    %535 = arith.addf %531, %534 : vector<8x126xf32>
    %c26_146 = arith.constant 26 : index
    %536 = memref.load %arg3[%c26_146] : memref<72xf32, #tpu.memory_space<smem>>
    %537 = vector.broadcast %536 : f32 to vector<8x126xf32>
    %538 = arith.mulf %422, %537 : vector<8x126xf32>
    %539 = arith.addf %535, %538 : vector<8x126xf32>
    %c2_147 = arith.constant 2 : index
    %540 = memref.load %arg4[%c2_147] : memref<8xf32, #tpu.memory_space<smem>>
    %541 = vector.broadcast %540 : f32 to vector<8x126xf32>
    %542 = arith.addf %539, %541 : vector<8x126xf32>
    %c0_148 = arith.constant 0 : index
    %c2_149 = arith.constant 2 : index
    %c32_150 = arith.constant 32 : index
    %c0_151 = arith.constant 0 : index
    %543 = vector.load %arg5[%c0_148, %c2_149, %c32_150, %c0_151] : memref<1x8x40x126xf32, #tpu.memory_space<vmem>>, vector<1x1x8x126xf32>
    %544 = vector.shape_cast %543 : vector<1x1x8x126xf32> to vector<8x126xf32>
    %545 = vector.shape_cast %542 : vector<8x126xf32> to vector<1x1x8x126xf32>
    tpu.vector_store %arg5[%c0_148, %c2_149, %c32_150, %c0_151], %545 {strides = array<i32>} : memref<1x8x40x126xf32, #tpu.memory_space<vmem>>, vector<1x1x8x126xf32>,
    %c27_152 = arith.constant 27 : index
    %546 = memref.load %arg3[%c27_152] : memref<72xf32, #tpu.memory_space<smem>>
    %547 = vector.broadcast %546 : f32 to vector<8x126xf32>
    %548 = arith.mulf %382, %547 : vector<8x126xf32>
    %c28_153 = arith.constant 28 : index
    %549 = memref.load %arg3[%c28_153] : memref<72xf32, #tpu.memory_space<smem>>
    %550 = vector.broadcast %549 : f32 to vector<8x126xf32>
    %551 = arith.mulf %387, %550 : vector<8x126xf32>
    %552 = arith.addf %548, %551 : vector<8x126xf32>
    %c29_154 = arith.constant 29 : index
    %553 = memref.load %arg3[%c29_154] : memref<72xf32, #tpu.memory_space<smem>>
    %554 = vector.broadcast %553 : f32 to vector<8x126xf32>
    %555 = arith.mulf %392, %554 : vector<8x126xf32>
    %556 = arith.addf %552, %555 : vector<8x126xf32>
    %c30_155 = arith.constant 30 : index
    %557 = memref.load %arg3[%c30_155] : memref<72xf32, #tpu.memory_space<smem>>
    %558 = vector.broadcast %557 : f32 to vector<8x126xf32>
    %559 = arith.mulf %397, %558 : vector<8x126xf32>
    %560 = arith.addf %556, %559 : vector<8x126xf32>
    %c31_156 = arith.constant 31 : index
    %561 = memref.load %arg3[%c31_156] : memref<72xf32, #tpu.memory_space<smem>>
    %562 = vector.broadcast %561 : f32 to vector<8x126xf32>
    %563 = arith.mulf %402, %562 : vector<8x126xf32>
    %564 = arith.addf %560, %563 : vector<8x126xf32>
    %c32_157 = arith.constant 32 : index
    %565 = memref.load %arg3[%c32_157] : memref<72xf32, #tpu.memory_space<smem>>
    %566 = vector.broadcast %565 : f32 to vector<8x126xf32>
    %567 = arith.mulf %407, %566 : vector<8x126xf32>
    %568 = arith.addf %564, %567 : vector<8x126xf32>
    %c33_158 = arith.constant 33 : index
    %569 = memref.load %arg3[%c33_158] : memref<72xf32, #tpu.memory_space<smem>>
    %570 = vector.broadcast %569 : f32 to vector<8x126xf32>
    %571 = arith.mulf %412, %570 : vector<8x126xf32>
    %572 = arith.addf %568, %571 : vector<8x126xf32>
    %c34_159 = arith.constant 34 : index
    %573 = memref.load %arg3[%c34_159] : memref<72xf32, #tpu.memory_space<smem>>
    %574 = vector.broadcast %573 : f32 to vector<8x126xf32>
    %575 = arith.mulf %417, %574 : vector<8x126xf32>
    %576 = arith.addf %572, %575 : vector<8x126xf32>
    %c35_160 = arith.constant 35 : index
    %577 = memref.load %arg3[%c35_160] : memref<72xf32, #tpu.memory_space<smem>>
    %578 = vector.broadcast %577 : f32 to vector<8x126xf32>
    %579 = arith.mulf %422, %578 : vector<8x126xf32>
    %580 = arith.addf %576, %579 : vector<8x126xf32>
    %c3_161 = arith.constant 3 : index
    %581 = memref.load %arg4[%c3_161] : memref<8xf32, #tpu.memory_space<smem>>
    %582 = vector.broadcast %581 : f32 to vector<8x126xf32>
    %583 = arith.addf %580, %582 : vector<8x126xf32>
    %c0_162 = arith.constant 0 : index
    %c3_163 = arith.constant 3 : index
    %c32_164 = arith.constant 32 : index
    %c0_165 = arith.constant 0 : index
    %584 = vector.load %arg5[%c0_162, %c3_163, %c32_164, %c0_165] : memref<1x8x40x126xf32, #tpu.memory_space<vmem>>, vector<1x1x8x126xf32>
    %585 = vector.shape_cast %584 : vector<1x1x8x126xf32> to vector<8x126xf32>
    %586 = vector.shape_cast %583 : vector<8x126xf32> to vector<1x1x8x126xf32>
    tpu.vector_store %arg5[%c0_162, %c3_163, %c32_164, %c0_165], %586 {strides = array<i32>} : memref<1x8x40x126xf32, #tpu.memory_space<vmem>>, vector<1x1x8x126xf32>,
    %c36_166 = arith.constant 36 : index
    %587 = memref.load %arg3[%c36_166] : memref<72xf32, #tpu.memory_space<smem>>
    %588 = vector.broadcast %587 : f32 to vector<8x126xf32>
    %589 = arith.mulf %382, %588 : vector<8x126xf32>
    %c37_167 = arith.constant 37 : index
    %590 = memref.load %arg3[%c37_167] : memref<72xf32, #tpu.memory_space<smem>>
    %591 = vector.broadcast %590 : f32 to vector<8x126xf32>
    %592 = arith.mulf %387, %591 : vector<8x126xf32>
    %593 = arith.addf %589, %592 : vector<8x126xf32>
    %c38_168 = arith.constant 38 : index
    %594 = memref.load %arg3[%c38_168] : memref<72xf32, #tpu.memory_space<smem>>
    %595 = vector.broadcast %594 : f32 to vector<8x126xf32>
    %596 = arith.mulf %392, %595 : vector<8x126xf32>
    %597 = arith.addf %593, %596 : vector<8x126xf32>
    %c39_169 = arith.constant 39 : index
    %598 = memref.load %arg3[%c39_169] : memref<72xf32, #tpu.memory_space<smem>>
    %599 = vector.broadcast %598 : f32 to vector<8x126xf32>
    %600 = arith.mulf %397, %599 : vector<8x126xf32>
    %601 = arith.addf %597, %600 : vector<8x126xf32>
    %c40_170 = arith.constant 40 : index
    %602 = memref.load %arg3[%c40_170] : memref<72xf32, #tpu.memory_space<smem>>
    %603 = vector.broadcast %602 : f32 to vector<8x126xf32>
    %604 = arith.mulf %402, %603 : vector<8x126xf32>
    %605 = arith.addf %601, %604 : vector<8x126xf32>
    %c41_171 = arith.constant 41 : index
    %606 = memref.load %arg3[%c41_171] : memref<72xf32, #tpu.memory_space<smem>>
    %607 = vector.broadcast %606 : f32 to vector<8x126xf32>
    %608 = arith.mulf %407, %607 : vector<8x126xf32>
    %609 = arith.addf %605, %608 : vector<8x126xf32>
    %c42_172 = arith.constant 42 : index
    %610 = memref.load %arg3[%c42_172] : memref<72xf32, #tpu.memory_space<smem>>
    %611 = vector.broadcast %610 : f32 to vector<8x126xf32>
    %612 = arith.mulf %412, %611 : vector<8x126xf32>
    %613 = arith.addf %609, %612 : vector<8x126xf32>
    %c43_173 = arith.constant 43 : index
    %614 = memref.load %arg3[%c43_173] : memref<72xf32, #tpu.memory_space<smem>>
    %615 = vector.broadcast %614 : f32 to vector<8x126xf32>
    %616 = arith.mulf %417, %615 : vector<8x126xf32>
    %617 = arith.addf %613, %616 : vector<8x126xf32>
    %c44_174 = arith.constant 44 : index
    %618 = memref.load %arg3[%c44_174] : memref<72xf32, #tpu.memory_space<smem>>
    %619 = vector.broadcast %618 : f32 to vector<8x126xf32>
    %620 = arith.mulf %422, %619 : vector<8x126xf32>
    %621 = arith.addf %617, %620 : vector<8x126xf32>
    %c4_175 = arith.constant 4 : index
    %622 = memref.load %arg4[%c4_175] : memref<8xf32, #tpu.memory_space<smem>>
    %623 = vector.broadcast %622 : f32 to vector<8x126xf32>
    %624 = arith.addf %621, %623 : vector<8x126xf32>
    %c0_176 = arith.constant 0 : index
    %c4_177 = arith.constant 4 : index
    %c32_178 = arith.constant 32 : index
    %c0_179 = arith.constant 0 : index
    %625 = vector.load %arg5[%c0_176, %c4_177, %c32_178, %c0_179] : memref<1x8x40x126xf32, #tpu.memory_space<vmem>>, vector<1x1x8x126xf32>
    %626 = vector.shape_cast %625 : vector<1x1x8x126xf32> to vector<8x126xf32>
    %627 = vector.shape_cast %624 : vector<8x126xf32> to vector<1x1x8x126xf32>
    tpu.vector_store %arg5[%c0_176, %c4_177, %c32_178, %c0_179], %627 {strides = array<i32>} : memref<1x8x40x126xf32, #tpu.memory_space<vmem>>, vector<1x1x8x126xf32>,
    %c45_180 = arith.constant 45 : index
    %628 = memref.load %arg3[%c45_180] : memref<72xf32, #tpu.memory_space<smem>>
    %629 = vector.broadcast %628 : f32 to vector<8x126xf32>
    %630 = arith.mulf %382, %629 : vector<8x126xf32>
    %c46_181 = arith.constant 46 : index
    %631 = memref.load %arg3[%c46_181] : memref<72xf32, #tpu.memory_space<smem>>
    %632 = vector.broadcast %631 : f32 to vector<8x126xf32>
    %633 = arith.mulf %387, %632 : vector<8x126xf32>
    %634 = arith.addf %630, %633 : vector<8x126xf32>
    %c47_182 = arith.constant 47 : index
    %635 = memref.load %arg3[%c47_182] : memref<72xf32, #tpu.memory_space<smem>>
    %636 = vector.broadcast %635 : f32 to vector<8x126xf32>
    %637 = arith.mulf %392, %636 : vector<8x126xf32>
    %638 = arith.addf %634, %637 : vector<8x126xf32>
    %c48_183 = arith.constant 48 : index
    %639 = memref.load %arg3[%c48_183] : memref<72xf32, #tpu.memory_space<smem>>
    %640 = vector.broadcast %639 : f32 to vector<8x126xf32>
    %641 = arith.mulf %397, %640 : vector<8x126xf32>
    %642 = arith.addf %638, %641 : vector<8x126xf32>
    %c49_184 = arith.constant 49 : index
    %643 = memref.load %arg3[%c49_184] : memref<72xf32, #tpu.memory_space<smem>>
    %644 = vector.broadcast %643 : f32 to vector<8x126xf32>
    %645 = arith.mulf %402, %644 : vector<8x126xf32>
    %646 = arith.addf %642, %645 : vector<8x126xf32>
    %c50_185 = arith.constant 50 : index
    %647 = memref.load %arg3[%c50_185] : memref<72xf32, #tpu.memory_space<smem>>
    %648 = vector.broadcast %647 : f32 to vector<8x126xf32>
    %649 = arith.mulf %407, %648 : vector<8x126xf32>
    %650 = arith.addf %646, %649 : vector<8x126xf32>
    %c51_186 = arith.constant 51 : index
    %651 = memref.load %arg3[%c51_186] : memref<72xf32, #tpu.memory_space<smem>>
    %652 = vector.broadcast %651 : f32 to vector<8x126xf32>
    %653 = arith.mulf %412, %652 : vector<8x126xf32>
    %654 = arith.addf %650, %653 : vector<8x126xf32>
    %c52_187 = arith.constant 52 : index
    %655 = memref.load %arg3[%c52_187] : memref<72xf32, #tpu.memory_space<smem>>
    %656 = vector.broadcast %655 : f32 to vector<8x126xf32>
    %657 = arith.mulf %417, %656 : vector<8x126xf32>
    %658 = arith.addf %654, %657 : vector<8x126xf32>
    %c53_188 = arith.constant 53 : index
    %659 = memref.load %arg3[%c53_188] : memref<72xf32, #tpu.memory_space<smem>>
    %660 = vector.broadcast %659 : f32 to vector<8x126xf32>
    %661 = arith.mulf %422, %660 : vector<8x126xf32>
    %662 = arith.addf %658, %661 : vector<8x126xf32>
    %c5_189 = arith.constant 5 : index
    %663 = memref.load %arg4[%c5_189] : memref<8xf32, #tpu.memory_space<smem>>
    %664 = vector.broadcast %663 : f32 to vector<8x126xf32>
    %665 = arith.addf %662, %664 : vector<8x126xf32>
    %c0_190 = arith.constant 0 : index
    %c5_191 = arith.constant 5 : index
    %c32_192 = arith.constant 32 : index
    %c0_193 = arith.constant 0 : index
    %666 = vector.load %arg5[%c0_190, %c5_191, %c32_192, %c0_193] : memref<1x8x40x126xf32, #tpu.memory_space<vmem>>, vector<1x1x8x126xf32>
    %667 = vector.shape_cast %666 : vector<1x1x8x126xf32> to vector<8x126xf32>
    %668 = vector.shape_cast %665 : vector<8x126xf32> to vector<1x1x8x126xf32>
    tpu.vector_store %arg5[%c0_190, %c5_191, %c32_192, %c0_193], %668 {strides = array<i32>} : memref<1x8x40x126xf32, #tpu.memory_space<vmem>>, vector<1x1x8x126xf32>,
    %c54_194 = arith.constant 54 : index
    %669 = memref.load %arg3[%c54_194] : memref<72xf32, #tpu.memory_space<smem>>
    %670 = vector.broadcast %669 : f32 to vector<8x126xf32>
    %671 = arith.mulf %382, %670 : vector<8x126xf32>
    %c55_195 = arith.constant 55 : index
    %672 = memref.load %arg3[%c55_195] : memref<72xf32, #tpu.memory_space<smem>>
    %673 = vector.broadcast %672 : f32 to vector<8x126xf32>
    %674 = arith.mulf %387, %673 : vector<8x126xf32>
    %675 = arith.addf %671, %674 : vector<8x126xf32>
    %c56_196 = arith.constant 56 : index
    %676 = memref.load %arg3[%c56_196] : memref<72xf32, #tpu.memory_space<smem>>
    %677 = vector.broadcast %676 : f32 to vector<8x126xf32>
    %678 = arith.mulf %392, %677 : vector<8x126xf32>
    %679 = arith.addf %675, %678 : vector<8x126xf32>
    %c57_197 = arith.constant 57 : index
    %680 = memref.load %arg3[%c57_197] : memref<72xf32, #tpu.memory_space<smem>>
    %681 = vector.broadcast %680 : f32 to vector<8x126xf32>
    %682 = arith.mulf %397, %681 : vector<8x126xf32>
    %683 = arith.addf %679, %682 : vector<8x126xf32>
    %c58_198 = arith.constant 58 : index
    %684 = memref.load %arg3[%c58_198] : memref<72xf32, #tpu.memory_space<smem>>
    %685 = vector.broadcast %684 : f32 to vector<8x126xf32>
    %686 = arith.mulf %402, %685 : vector<8x126xf32>
    %687 = arith.addf %683, %686 : vector<8x126xf32>
    %c59_199 = arith.constant 59 : index
    %688 = memref.load %arg3[%c59_199] : memref<72xf32, #tpu.memory_space<smem>>
    %689 = vector.broadcast %688 : f32 to vector<8x126xf32>
    %690 = arith.mulf %407, %689 : vector<8x126xf32>
    %691 = arith.addf %687, %690 : vector<8x126xf32>
    %c60_200 = arith.constant 60 : index
    %692 = memref.load %arg3[%c60_200] : memref<72xf32, #tpu.memory_space<smem>>
    %693 = vector.broadcast %692 : f32 to vector<8x126xf32>
    %694 = arith.mulf %412, %693 : vector<8x126xf32>
    %695 = arith.addf %691, %694 : vector<8x126xf32>
    %c61_201 = arith.constant 61 : index
    %696 = memref.load %arg3[%c61_201] : memref<72xf32, #tpu.memory_space<smem>>
    %697 = vector.broadcast %696 : f32 to vector<8x126xf32>
    %698 = arith.mulf %417, %697 : vector<8x126xf32>
    %699 = arith.addf %695, %698 : vector<8x126xf32>
    %c62_202 = arith.constant 62 : index
    %700 = memref.load %arg3[%c62_202] : memref<72xf32, #tpu.memory_space<smem>>
    %701 = vector.broadcast %700 : f32 to vector<8x126xf32>
    %702 = arith.mulf %422, %701 : vector<8x126xf32>
    %703 = arith.addf %699, %702 : vector<8x126xf32>
    %c6_203 = arith.constant 6 : index
    %704 = memref.load %arg4[%c6_203] : memref<8xf32, #tpu.memory_space<smem>>
    %705 = vector.broadcast %704 : f32 to vector<8x126xf32>
    %706 = arith.addf %703, %705 : vector<8x126xf32>
    %c0_204 = arith.constant 0 : index
    %c6_205 = arith.constant 6 : index
    %c32_206 = arith.constant 32 : index
    %c0_207 = arith.constant 0 : index
    %707 = vector.load %arg5[%c0_204, %c6_205, %c32_206, %c0_207] : memref<1x8x40x126xf32, #tpu.memory_space<vmem>>, vector<1x1x8x126xf32>
    %708 = vector.shape_cast %707 : vector<1x1x8x126xf32> to vector<8x126xf32>
    %709 = vector.shape_cast %706 : vector<8x126xf32> to vector<1x1x8x126xf32>
    tpu.vector_store %arg5[%c0_204, %c6_205, %c32_206, %c0_207], %709 {strides = array<i32>} : memref<1x8x40x126xf32, #tpu.memory_space<vmem>>, vector<1x1x8x126xf32>,
    %c63_208 = arith.constant 63 : index
    %710 = memref.load %arg3[%c63_208] : memref<72xf32, #tpu.memory_space<smem>>
    %711 = vector.broadcast %710 : f32 to vector<8x126xf32>
    %712 = arith.mulf %382, %711 : vector<8x126xf32>
    %c64_209 = arith.constant 64 : index
    %713 = memref.load %arg3[%c64_209] : memref<72xf32, #tpu.memory_space<smem>>
    %714 = vector.broadcast %713 : f32 to vector<8x126xf32>
    %715 = arith.mulf %387, %714 : vector<8x126xf32>
    %716 = arith.addf %712, %715 : vector<8x126xf32>
    %c65_210 = arith.constant 65 : index
    %717 = memref.load %arg3[%c65_210] : memref<72xf32, #tpu.memory_space<smem>>
    %718 = vector.broadcast %717 : f32 to vector<8x126xf32>
    %719 = arith.mulf %392, %718 : vector<8x126xf32>
    %720 = arith.addf %716, %719 : vector<8x126xf32>
    %c66_211 = arith.constant 66 : index
    %721 = memref.load %arg3[%c66_211] : memref<72xf32, #tpu.memory_space<smem>>
    %722 = vector.broadcast %721 : f32 to vector<8x126xf32>
    %723 = arith.mulf %397, %722 : vector<8x126xf32>
    %724 = arith.addf %720, %723 : vector<8x126xf32>
    %c67_212 = arith.constant 67 : index
    %725 = memref.load %arg3[%c67_212] : memref<72xf32, #tpu.memory_space<smem>>
    %726 = vector.broadcast %725 : f32 to vector<8x126xf32>
    %727 = arith.mulf %402, %726 : vector<8x126xf32>
    %728 = arith.addf %724, %727 : vector<8x126xf32>
    %c68_213 = arith.constant 68 : index
    %729 = memref.load %arg3[%c68_213] : memref<72xf32, #tpu.memory_space<smem>>
    %730 = vector.broadcast %729 : f32 to vector<8x126xf32>
    %731 = arith.mulf %407, %730 : vector<8x126xf32>
    %732 = arith.addf %728, %731 : vector<8x126xf32>
    %c69_214 = arith.constant 69 : index
    %733 = memref.load %arg3[%c69_214] : memref<72xf32, #tpu.memory_space<smem>>
    %734 = vector.broadcast %733 : f32 to vector<8x126xf32>
    %735 = arith.mulf %412, %734 : vector<8x126xf32>
    %736 = arith.addf %732, %735 : vector<8x126xf32>
    %c70_215 = arith.constant 70 : index
    %737 = memref.load %arg3[%c70_215] : memref<72xf32, #tpu.memory_space<smem>>
    %738 = vector.broadcast %737 : f32 to vector<8x126xf32>
    %739 = arith.mulf %417, %738 : vector<8x126xf32>
    %740 = arith.addf %736, %739 : vector<8x126xf32>
    %c71_216 = arith.constant 71 : index
    %741 = memref.load %arg3[%c71_216] : memref<72xf32, #tpu.memory_space<smem>>
    %742 = vector.broadcast %741 : f32 to vector<8x126xf32>
    %743 = arith.mulf %422, %742 : vector<8x126xf32>
    %744 = arith.addf %740, %743 : vector<8x126xf32>
    %c7_217 = arith.constant 7 : index
    %745 = memref.load %arg4[%c7_217] : memref<8xf32, #tpu.memory_space<smem>>
    %746 = vector.broadcast %745 : f32 to vector<8x126xf32>
    %747 = arith.addf %744, %746 : vector<8x126xf32>
    %c0_218 = arith.constant 0 : index
    %c7_219 = arith.constant 7 : index
    %c32_220 = arith.constant 32 : index
    %c0_221 = arith.constant 0 : index
    %748 = vector.load %arg5[%c0_218, %c7_219, %c32_220, %c0_221] : memref<1x8x40x126xf32, #tpu.memory_space<vmem>>, vector<1x1x8x126xf32>
    %749 = vector.shape_cast %748 : vector<1x1x8x126xf32> to vector<8x126xf32>
    %750 = vector.shape_cast %747 : vector<8x126xf32> to vector<1x1x8x126xf32>
    tpu.vector_store %arg5[%c0_218, %c7_219, %c32_220, %c0_221], %750 {strides = array<i32>} : memref<1x8x40x126xf32, #tpu.memory_space<vmem>>, vector<1x1x8x126xf32>,
    return
  }
  func.func @transform_0(%arg0: i32, %arg1: i32) -> (i32, i32, i32) {
    %c0_i32 = arith.constant 0 : i32
    %c0_i32_0 = arith.constant 0 : i32
    %c0_i32_1 = arith.constant 0 : i32
    return %arg0, %c0_i32, %c0_i32_0 : i32, i32, i32
  }
  func.func @transform_1(%arg0: i32, %arg1: i32) -> i32 {
    %c0_i32 = arith.constant 0 : i32
    %c0_i32_0 = arith.constant 0 : i32
    return %c0_i32 : i32
  }
  func.func @transform_2(%arg0: i32, %arg1: i32) -> i32 {
    %c0_i32 = arith.constant 0 : i32
    %c0_i32_0 = arith.constant 0 : i32
    return %c0_i32 : i32
  }
  func.func @transform_3(%arg0: i32, %arg1: i32) -> (i32, i32, i32, i32) {
    %c0_i32 = arith.constant 0 : i32
    %c0_i32_0 = arith.constant 0 : i32
    %c0_i32_1 = arith.constant 0 : i32
    return %arg0, %c0_i32, %arg1, %c0_i32_0 : i32, i32, i32, i32
  }
}

</mosaic_0001>

<llo_original>
// kernel: tpu_custom_call.1
$region0: #{tpu_custom_call.1}
  #allocation0 [shape = 'u32[]', space=smem, size = 0x4, offset = 0x4, fixed_abs, tag = 'smem constant byte address 0x4 - core index']
  #allocation1 [shape = 'u32[144,128]{1,0:T(1,128)}', space=vmem, size = 0x12000, scoped, tag = 'internal scratch']
  #allocation2 [shape = 'f32[3,122,126]{2,1,0:T(8,128)}', space=vmem, size = 0x30000, scoped, tag = 'scratch operand']
  #allocation9 [shape = 's32[]', space=sflag, size = 0x4, offset = 0, fixed_abs, tag = 'sflag constant byte address 0x0 - dummy sync flag']
  %s0 = inlined_call_operand.vmem [shape: f32[2,126,120], index: 0, kind: input, shape index: {}]
  %s1 = inlined_call_operand.vmem [shape: f32[72], index: 1, kind: input, shape index: {}]
  %s2 = inlined_call_operand.vmem [shape: f32[8], index: 2, kind: input, shape index: {}]
  %s3 = inlined_call_operand.hbm [shape: f32[2,8,120,126], index: 3, kind: output, shape index: {}]
  %s4 = sld [smem:[#allocation0]]
  $region57: #{tpu_custom_call.1} parent=0
    _
  %s6 = ssub.s32 1, %s4
  %s7 = scalar_select 0, %s6, %s4
  $region1: #{tpu_custom_call.1} parent=0
    #allocation3 [shape = 'u8[512]{0}', space=smem, size = 0x200, scoped, tag = 'input window, operand 1, single buffered']
    #allocation4 [shape = 's32[2]{0}', space=sflag, size = 0x8, scoped, tag = 'scoped memory for tpu_custom_call.1']
    #allocation5 [shape = 's32[2]{0}', space=sflag, size = 0x8, scoped, tag = 'scoped memory for tpu_custom_call.1']
    #allocation6 [shape = 'u8[512]{0}', space=smem, size = 0x200, scoped, tag = 'input window, operand 2, single buffered']
    #allocation7 [shape = 's32[1]{0}', space=sflag, size = 0x4, scoped, tag = 'scoped memory for tpu_custom_call.1']
    #allocation8 [shape = 'u8[327680]{0}', space=vmem, size = 0x50000, scoped, tag = 'output window, operand 0']
    %8 = vsyncpa [#allocation5], 0
    %9 = vsyncpa [#allocation7], 0
    %10 = vsyncpa [#allocation4], 0
    %s11 = scalar_lea.sflag [#allocation4], 1
    %12 = vsyncpa %s11, 0
    loop: start=0, step=1, limit=8
    $region2: #{tpu_custom_call.1} parent=1 // loop_pre_header
      _
    $region3: #{tpu_custom_call.1} parent=1 // loop_header
      %s14 = sphi 0, %s18
      %p15 = scmp.ge.s32.totalorder %s14, 8
      %s21 = sphi 0, %s33
      %s22 = sphi 0, %s29
      %s23 = sphi 0, %s21
      %s24 = sphi 0, %s22
      %s25 = sphi 0, %s23
      %s26 = sphi 0, %s24
      %s36 = sphi 0, %s38
      %s39 = sphi 0, %s36
      %s40 = sphi 0, %s39
      %s56 = sphi 0, %s40
      %s60 = sphi 0, %s60
      %s62 = sphi 0, %s60
      %s63 = sphi 0, %s62
      %s77 = sphi 0, %s63
      %s81 = sphi 0, %s81
      %s83 = sphi 0, %s81
      %s84 = sphi 0, %s83
      %s98 = sphi 0, %s84
      %s106 = sphi 0, %s108
      %s109 = sphi 0, %s106
      %s110 = sphi 0, %s109
      %s126 = sphi 0, %s110
    $region4: #{tpu_custom_call.1} parent=1 // loop_header_branch
      %17 = sbr.rel (%p15) target = $region8
    $region5: #{tpu_custom_call.1} parent=1 // loop_body
      %s19 = ssub.s32 %s14, 1
      %s20 = ssub.s32 %s14, 2
      %s27 = sadd.s32 1, %s22
      %p28 = scmp.ge.s32.totalorder %s27, 3
      %s29 = scalar_select %p28, 0, %s27
      %s30 = sadd.s32 1, %s21
      %s31 = scalar_select %p28, %s30, %s21
      %p32 = scmp.ge.s32.totalorder %s31, 2
      %s33 = scalar_select %p32, 0, %s31
      %s34 = ssub.s32 %s21, %s33
      %p35 = scmp.eq.s32.totalorder %s34, 0
      %s37 = sadd.s32 %s36, 1
      %s38 = scalar_select %p35, %s36, %s37
      %p41 = pneg %p35
      %p42 = scmp.eq.s32.totalorder %s14, 5
      %p43 = por %p41, %p42
      %p44 = scmp.ne.s32.totalorder %s36, %s39
      %p45 = scmp.eq.s32.totalorder %s14, 0
      %p46 = por %p44, %p45
      %p47 = scmp.ne.s32.totalorder %s36, %s39
      %p48 = scmp.eq.s32.totalorder %s19, 5
      %p49 = por %p47, %p48
      %p50 = scmp.ne.s32.totalorder %s39, %s40
      %p51 = scmp.eq.s32.totalorder %s19, 0
      %p52 = por %p50, %p51
      %p53 = scmp.ne.s32.totalorder %s39, %s40
      %p54 = scmp.eq.s32.totalorder %s20, 5
      %p55 = por %p53, %p54
      %p57 = scmp.ne.s32.totalorder %s40, %s56
      %p58 = scmp.eq.s32.totalorder %s20, 0
      %p59 = por %p57, %p58
      %s61 = sadd.s32 %s60, 1
      %p64 = scmp.eq.s32.totalorder %s14, 5
      %p65 = scmp.ne.s32.totalorder %s60, %s62
      %p66 = scmp.eq.s32.totalorder %s14, 0
      %p67 = por %p65, %p66
      %p68 = scmp.ne.s32.totalorder %s60, %s62
      %p69 = scmp.eq.s32.totalorder %s19, 5
      %p70 = por %p68, %p69
      %p71 = scmp.ne.s32.totalorder %s62, %s63
      %p72 = scmp.eq.s32.totalorder %s19, 0
      %p73 = por %p71, %p72
      %p74 = scmp.ne.s32.totalorder %s62, %s63
      %p75 = scmp.eq.s32.totalorder %s20, 5
      %p76 = por %p74, %p75
      %p78 = scmp.ne.s32.totalorder %s63, %s77
      %p79 = scmp.eq.s32.totalorder %s20, 0
      %p80 = por %p78, %p79
      %s82 = sadd.s32 %s81, 1
      %p85 = scmp.eq.s32.totalorder %s14, 5
      %p86 = scmp.ne.s32.totalorder %s81, %s83
      %p87 = scmp.eq.s32.totalorder %s14, 0
      %p88 = por %p86, %p87
      %p89 = scmp.ne.s32.totalorder %s81, %s83
      %p90 = scmp.eq.s32.totalorder %s19, 5
      %p91 = por %p89, %p90
      %p92 = scmp.ne.s32.totalorder %s83, %s84
      %p93 = scmp.eq.s32.totalorder %s19, 0
      %p94 = por %p92, %p93
      %p95 = scmp.ne.s32.totalorder %s83, %s84
      %p96 = scmp.eq.s32.totalorder %s20, 5
      %p97 = por %p95, %p96
      %p99 = scmp.ne.s32.totalorder %s84, %s98
      %p100 = scmp.eq.s32.totalorder %s20, 0
      %p101 = por %p99, %p100
      %s102 = ssub.s32 %s21, %s33
      %s103 = ssub.s32 %s22, %s29
      %s104 = sor.u32 %s102, %s103
      %p105 = scmp.eq.s32.totalorder %s104, 0
      %s107 = sadd.s32 %s106, 1
      %s108 = scalar_select %p105, %s106, %s107
      %p111 = pneg %p105
      %p112 = scmp.eq.s32.totalorder %s14, 5
      %p113 = por %p111, %p112
      %p114 = scmp.ne.s32.totalorder %s106, %s109
      %p115 = scmp.eq.s32.totalorder %s14, 0
      %p116 = por %p114, %p115
      %p117 = scmp.ne.s32.totalorder %s106, %s109
      %p118 = scmp.eq.s32.totalorder %s19, 5
      %p119 = por %p117, %p118
      %p120 = scmp.ne.s32.totalorder %s109, %s110
      %p121 = scmp.eq.s32.totalorder %s19, 0
      %p122 = por %p120, %p121
      %p123 = scmp.ne.s32.totalorder %s109, %s110
      %p124 = scmp.eq.s32.totalorder %s20, 5
      %p125 = por %p123, %p124
      %p127 = scmp.ne.s32.totalorder %s110, %s126
      %p128 = scmp.eq.s32.totalorder %s20, 0
      %p129 = por %p127, %p128
      %p130 = scmp.le.s32.totalorder 1, %s14
      %p131 = scmp.lt.s32.totalorder %s14, 7
      %p132 = pnand %p130, %p131
      %p133 = pneg %p132
      // Predicated region
      $region9: #{tpu_custom_call.1} parent=5 // pred_check
        _
      $region10: #{tpu_custom_call.1} parent=5 // pred_check_branch
        %135 = sbr.rel (%p132) target = $region12
      $region11: #{tpu_custom_call.1} parent=5 // pred_region
        %s136 = ssub.s32 %s14, 1
        // Predicated region
        $region13: #{tpu_custom_call.1} parent=11 // pred_check
          %p137 = pneg %p73
        $region14: #{tpu_custom_call.1} parent=11 // pred_check_branch
          %139 = sbr.rel (%p137) target = $region16
        $region15: #{tpu_custom_call.1} parent=11 // pred_region
          %s141 = ssub.s32 16, 16
          %142 = vsyncadd [#allocation5], %s141
          %s144 = sshll.u32 %s1, 4
          %s145 = int_to_ptr.vmem [resolvable:$true] %s144
          %147 = dma.vmem_to_smem %s145, 16, [#allocation3], [#allocation5]
        $region16: #{tpu_custom_call.1} parent=11 // pred_fallthru
          _
        // Predicated region
        $region17: #{tpu_custom_call.1} parent=11 // pred_check
          %p148 = pneg %p94
        $region18: #{tpu_custom_call.1} parent=11 // pred_check_branch
          %150 = sbr.rel (%p148) target = $region20
        $region19: #{tpu_custom_call.1} parent=11 // pred_region
          %s152 = ssub.s32 16, 16
          %153 = vsyncadd [#allocation7], %s152
          %s155 = sshll.u32 %s2, 4
          %s156 = int_to_ptr.vmem [resolvable:$true] %s155
          %158 = dma.vmem_to_smem %s156, 16, [#allocation6], [#allocation7]
        $region20: #{tpu_custom_call.1} parent=11 // pred_fallthru
          _
      $region12: #{tpu_custom_call.1} parent=5 // pred_fallthru
        _
      %p159 = scmp.lt.s32.totalorder %s14, 6
      // Predicated region
      $region21: #{tpu_custom_call.1} parent=5 // pred_check
        %p160 = pneg %p159
      $region22: #{tpu_custom_call.1} parent=5 // pred_check_branch
        %162 = sbr.rel (%p160) target = $region24
      $region23: #{tpu_custom_call.1} parent=5 // pred_region
        // Predicated region
        $region25: #{tpu_custom_call.1} parent=23 // pred_check
          %p163 = pneg %p46
        $region26: #{tpu_custom_call.1} parent=23 // pred_check_branch
          %165 = sbr.rel (%p163) target = $region28
        $region27: #{tpu_custom_call.1} parent=23 // pred_region
          %p166 = scmp.lt.s32.totalorder %s21, 1
          %s167 = scalar_select %p166, %s21, 1
          %s168 = smul.addr %s167, 16
          %s169 = smul.addr %s168, 8
          %s170 = scalar_lea.vmem %s0, %s169
        $region28: #{tpu_custom_call.1} parent=23 // pred_fallthru
          _
      $region24: #{tpu_custom_call.1} parent=5 // pred_fallthru
        _
      %p171 = scmp.le.s32.totalorder 1, %s14
      %p172 = scmp.lt.s32.totalorder %s14, 7
      %p173 = pnand %p171, %p172
      %p174 = pneg %p173
      // Predicated region
      $region29: #{tpu_custom_call.1} parent=5 // pred_check
        _
      $region30: #{tpu_custom_call.1} parent=5 // pred_check_branch
        %176 = sbr.rel (%p173) target = $region32
      $region31: #{tpu_custom_call.1} parent=5 // pred_region
        %s177 = ssub.s32 %s14, 1
        // Predicated region
        $region33: #{tpu_custom_call.1} parent=31 // pred_check
          %p178 = pneg %p73
        $region34: #{tpu_custom_call.1} parent=31 // pred_check_branch
          %180 = sbr.rel (%p178) target = $region36
        $region35: #{tpu_custom_call.1} parent=31 // pred_region
          %181 = dma.done [#allocation5], 16
        $region36: #{tpu_custom_call.1} parent=31 // pred_fallthru
          _
        // Predicated region
        $region37: #{tpu_custom_call.1} parent=31 // pred_check
          %p182 = pneg %p94
        $region38: #{tpu_custom_call.1} parent=31 // pred_check_branch
          %184 = sbr.rel (%p182) target = $region40
        $region39: #{tpu_custom_call.1} parent=31 // pred_region
          %185 = dma.done [#allocation7], 16
        $region40: #{tpu_custom_call.1} parent=31 // pred_fallthru
          _
        %186 = sfence
        %p187 = scmp.lt.s32.totalorder %s23, 1
        %s188 = scalar_select %p187, %s23, 1
        %s189 = smul.addr %s188, 16
        %s190 = smul.addr %s189, 8
        %s191 = scalar_lea.vmem %s0, %s190
        %p192 = pneg %p52
        %p193 = pneg %p49
        %p194 = pneg %p73
        %p195 = pneg %p70
        %p196 = pneg %p94
        %p197 = pneg %p91
        %p198 = pneg %p122
        %p199 = pneg %p119
        %s200 = sand.u32 %s109, 1
        %s201 = scalar_lea.sflag [#allocation4], %s200
        %s202 = sand.u32 %s109, 1
        %s203 = smul.addr %s202, 320
        %s204 = scalar_lea.vmem [#allocation8], %s203
        %p205 = scmp.lt.s32.totalorder %s23, 1
        %s206 = scalar_select %p205, %s23, 1
        %s207 = smul.addr %s206, 16
        %s208 = smul.addr %s207, 8
        %s209 = scalar_lea.vmem %s0, %s208
        %s210 = smul.u32 5, %s24
        %p211 = scmp.eq.s32.totalorder %s24, 0
        // Predicated region
        $region41: #{tpu_custom_call.1} parent=31 // pred_check
          %p212 = pneg %p211
        $region42: #{tpu_custom_call.1} parent=31 // pred_check_branch
          %214 = sbr.rel (%p212) target = $region44
        $region43: #{tpu_custom_call.1} parent=31 // pred_region
          %v215 = vld [vmem:[%s209] sm:$0xff]
          %v216 = vld [vmem:[%s209 + $0x8] sm:$0xff]
          %v217 = vld [vmem:[%s209 + $0x10] sm:$0xff]
          %v218 = vld [vmem:[%s209 + $0x18] sm:$0xff]
          %v219 = vld [vmem:[%s209 + $0x20] sm:$0xff]
          %v220 = vld [vmem:[%s209 + $0x28] sm:$0xff]
          %v221 = vld [vmem:[%s209 + $0x30] sm:$0xff]
          %v222 = vld [vmem:[%s209 + $0x38] sm:$0xff]
          %v223 = vld [vmem:[%s209 + $0x40] sm:$0xff]
          %v224 = vld [vmem:[%s209 + $0x48] sm:$0xff]
          %v225 = vld [vmem:[%s209 + $0x50] sm:$0xff]
          %v226 = vld [vmem:[%s209 + $0x58] sm:$0xff]
          %v227 = vld [vmem:[%s209 + $0x60] sm:$0xff]
          %v228 = vld [vmem:[%s209 + $0x68] sm:$0xff]
          %v229 = vld [vmem:[%s209 + $0x70] sm:$0xff]
          %v230 = vld [vmem:[%s209 + $0x78] sm:$0x3f]
          %vm247 = vcmask 1040384
          %v248 = vrot.slane %v215, 7
          %v249 = vrot.slane %v216, 7
          %v250 = vsel %vm247, %v248, %v249
          %v251 = vrot.slane %v217, 7
          %v252 = vsel %vm247, %v249, %v251
          %v253 = vrot.slane %v218, 7
          %v254 = vsel %vm247, %v251, %v253
          %v255 = vrot.slane %v219, 7
          %v256 = vsel %vm247, %v253, %v255
          %v257 = vrot.slane %v220, 7
          %v258 = vsel %vm247, %v255, %v257
          %v259 = vrot.slane %v221, 7
          %v260 = vsel %vm247, %v257, %v259
          %v261 = vrot.slane %v222, 7
          %v262 = vsel %vm247, %v259, %v261
          %v263 = vrot.slane %v223, 7
          %v264 = vsel %vm247, %v261, %v263
          %v265 = vrot.slane %v224, 7
          %v266 = vsel %vm247, %v263, %v265
          %v267 = vrot.slane %v225, 7
          %v268 = vsel %vm247, %v265, %v267
          %v269 = vrot.slane %v226, 7
          %v270 = vsel %vm247, %v267, %v269
          %v271 = vrot.slane %v227, 7
          %v272 = vsel %vm247, %v269, %v271
          %v273 = vrot.slane %v228, 7
          %v274 = vsel %vm247, %v271, %v273
          %v275 = vrot.slane %v229, 7
          %v276 = vsel %vm247, %v273, %v275
          %v277 = vrot.slane %v230, 7
          %v278 = vsel %vm247, %v275, %v277
          %v295 = vsel %vm247, 0.0, %v248
          %vm296 = vcmask 1046528
          %v297 = vsel %vm296, %v278, 0.0
          %298 = vxpose.xlu0.b32.start [1/16] %v295, 128
          %299 = vxpose.xlu0.b32.cont [2/16] %v250, 128
          %300 = vxpose.xlu0.b32.cont [3/16] %v252, 128
          %301 = vxpose.xlu0.b32.cont [4/16] %v254, 128
          %302 = vxpose.xlu0.b32.cont [5/16] %v256, 128
          %303 = vxpose.xlu0.b32.cont [6/16] %v258, 128
          %304 = vxpose.xlu0.b32.cont [7/16] %v260, 128
          %305 = vxpose.xlu0.b32.cont [8/16] %v262, 128
          %306 = vxpose.xlu0.b32.cont [9/16] %v264, 128
          %307 = vxpose.xlu0.b32.cont [10/16] %v266, 128
          %308 = vxpose.xlu0.b32.cont [11/16] %v268, 128
          %309 = vxpose.xlu0.b32.cont [12/16] %v270, 128
          %310 = vxpose.xlu0.b32.cont [13/16] %v272, 128
          %311 = vxpose.xlu0.b32.cont [14/16] %v274, 128
          %312 = vxpose.xlu0.b32.cont [15/16] %v276, 128
          %313 = vxpose.xlu0.b32.end [16/16] %v297, 128
          %v314 = vpop.trf.xlu0
          %v315 = vpop.trf.xlu0
          %v316 = vpop.trf.xlu0
          %v317 = vpop.trf.xlu0
          %v318 = vpop.trf.xlu0
          %v319 = vpop.trf.xlu0
          %v320 = vpop.trf.xlu0
          %v321 = vpop.trf.xlu0
          %v322 = vpop.trf.xlu0
          %v323 = vpop.trf.xlu0
          %v324 = vpop.trf.xlu0
          %v325 = vpop.trf.xlu0
          %v326 = vpop.trf.xlu0
          %v327 = vpop.trf.xlu0
          %v328 = vpop.trf.xlu0
          %v329 = vpop.trf.xlu0
          %vm330 = vcmask 1031168
          %331 = vst.msk [vmem:[#allocation2 + $0x1] sm:$0xff] %vm330, %v314
          %332 = vst.msk [vmem:[#allocation2 + $0x9] sm:$0xff] %vm330, %v315
          %333 = vst.msk [vmem:[#allocation2 + $0x11] sm:$0xff] %vm330, %v316
          %334 = vst.msk [vmem:[#allocation2 + $0x19] sm:$0xff] %vm330, %v317
          %335 = vst.msk [vmem:[#allocation2 + $0x21] sm:$0xff] %vm330, %v318
          %336 = vst.msk [vmem:[#allocation2 + $0x29] sm:$0xff] %vm330, %v319
          %337 = vst.msk [vmem:[#allocation2 + $0x31] sm:$0xff] %vm330, %v320
          %338 = vst.msk [vmem:[#allocation2 + $0x39] sm:$0xff] %vm330, %v321
          %339 = vst.msk [vmem:[#allocation2 + $0x41] sm:$0xff] %vm330, %v322
          %340 = vst.msk [vmem:[#allocation2 + $0x49] sm:$0xff] %vm330, %v323
          %341 = vst.msk [vmem:[#allocation2 + $0x51] sm:$0xff] %vm330, %v324
          %342 = vst.msk [vmem:[#allocation2 + $0x59] sm:$0xff] %vm330, %v325
          %343 = vst.msk [vmem:[#allocation2 + $0x61] sm:$0xff] %vm330, %v326
          %344 = vst.msk [vmem:[#allocation2 + $0x69] sm:$0xff] %vm330, %v327
          %345 = vst.msk [vmem:[#allocation2 + $0x71] sm:$0xff] %vm330, %v328
          %vm346 = vcmask 1024000
          %347 = vst.msk [vmem:[#allocation2] sm:$0x1] %vm346, 0.0
          %348 = vst.msk [vmem:[#allocation2 + $0x79] sm:$0x1] %vm346, 0.0
          %364 = vrot.lane.b32.xlu0 %v314, 127
          %v365 = vpop.permute.xlu0 %364
          %366 = vrot.lane.b32.xlu0 %v315, 127
          %v367 = vpop.permute.xlu0 %366
          %368 = vrot.lane.b32.xlu0 %v316, 127
          %v369 = vpop.permute.xlu0 %368
          %370 = vrot.lane.b32.xlu0 %v317, 127
          %v371 = vpop.permute.xlu0 %370
          %372 = vrot.lane.b32.xlu0 %v318, 127
          %v373 = vpop.permute.xlu0 %372
          %374 = vrot.lane.b32.xlu0 %v319, 127
          %v375 = vpop.permute.xlu0 %374
          %376 = vrot.lane.b32.xlu0 %v320, 127
          %v377 = vpop.permute.xlu0 %376
          %378 = vrot.lane.b32.xlu0 %v321, 127
          %v379 = vpop.permute.xlu0 %378
          %380 = vrot.lane.b32.xlu0 %v322, 127
          %v381 = vpop.permute.xlu0 %380
          %382 = vrot.lane.b32.xlu0 %v323, 127
          %v383 = vpop.permute.xlu0 %382
          %384 = vrot.lane.b32.xlu0 %v324, 127
          %v385 = vpop.permute.xlu0 %384
          %386 = vrot.lane.b32.xlu0 %v325, 127
          %v387 = vpop.permute.xlu0 %386
          %388 = vrot.lane.b32.xlu0 %v326, 127
          %v389 = vpop.permute.xlu0 %388
          %390 = vrot.lane.b32.xlu0 %v327, 127
          %v391 = vpop.permute.xlu0 %390
          %392 = vrot.lane.b32.xlu0 %v328, 127
          %v393 = vpop.permute.xlu0 %392
          %s409 = scalar_lea.vmem [#allocation2], 128
          %410 = vst.msk [vmem:[%s409 + $0x1] sm:$0xff] %vm330, %v365
          %411 = vst.msk [vmem:[%s409 + $0x9] sm:$0xff] %vm330, %v367
          %412 = vst.msk [vmem:[%s409 + $0x11] sm:$0xff] %vm330, %v369
          %413 = vst.msk [vmem:[%s409 + $0x19] sm:$0xff] %vm330, %v371
          %414 = vst.msk [vmem:[%s409 + $0x21] sm:$0xff] %vm330, %v373
          %415 = vst.msk [vmem:[%s409 + $0x29] sm:$0xff] %vm330, %v375
          %416 = vst.msk [vmem:[%s409 + $0x31] sm:$0xff] %vm330, %v377
          %417 = vst.msk [vmem:[%s409 + $0x39] sm:$0xff] %vm330, %v379
          %418 = vst.msk [vmem:[%s409 + $0x41] sm:$0xff] %vm330, %v381
          %419 = vst.msk [vmem:[%s409 + $0x49] sm:$0xff] %vm330, %v383
          %420 = vst.msk [vmem:[%s409 + $0x51] sm:$0xff] %vm330, %v385
          %421 = vst.msk [vmem:[%s409 + $0x59] sm:$0xff] %vm330, %v387
          %422 = vst.msk [vmem:[%s409 + $0x61] sm:$0xff] %vm330, %v389
          %423 = vst.msk [vmem:[%s409 + $0x69] sm:$0xff] %vm330, %v391
          %424 = vst.msk [vmem:[%s409 + $0x71] sm:$0xff] %vm330, %v393
          %425 = vst.msk [vmem:[%s409] sm:$0x1] %vm346, 0.0
          %426 = vst.msk [vmem:[%s409 + $0x79] sm:$0x1] %vm346, 0.0
          %427 = vrot.lane.b32.xlu0 %v314, 126
          %v428 = vpop.permute.xlu0 %427
          %429 = vrot.lane.b32.xlu0 %v315, 126
          %v430 = vpop.permute.xlu0 %429
          %431 = vrot.lane.b32.xlu0 %v316, 126
          %v432 = vpop.permute.xlu0 %431
          %433 = vrot.lane.b32.xlu0 %v317, 126
          %v434 = vpop.permute.xlu0 %433
          %435 = vrot.lane.b32.xlu0 %v318, 126
          %v436 = vpop.permute.xlu0 %435
          %437 = vrot.lane.b32.xlu0 %v319, 126
          %v438 = vpop.permute.xlu0 %437
          %439 = vrot.lane.b32.xlu0 %v320, 126
          %v440 = vpop.permute.xlu0 %439
          %441 = vrot.lane.b32.xlu0 %v321, 126
          %v442 = vpop.permute.xlu0 %441
          %443 = vrot.lane.b32.xlu0 %v322, 126
          %v444 = vpop.permute.xlu0 %443
          %445 = vrot.lane.b32.xlu0 %v323, 126
          %v446 = vpop.permute.xlu0 %445
          %447 = vrot.lane.b32.xlu0 %v324, 126
          %v448 = vpop.permute.xlu0 %447
          %449 = vrot.lane.b32.xlu0 %v325, 126
          %v450 = vpop.permute.xlu0 %449
          %451 = vrot.lane.b32.xlu0 %v326, 126
          %v452 = vpop.permute.xlu0 %451
          %453 = vrot.lane.b32.xlu0 %v327, 126
          %v454 = vpop.permute.xlu0 %453
          %455 = vrot.lane.b32.xlu0 %v328, 126
          %v456 = vpop.permute.xlu0 %455
          %s472 = scalar_lea.vmem [#allocation2], 256
          %473 = vst.msk [vmem:[%s472 + $0x1] sm:$0xff] %vm330, %v428
          %474 = vst.msk [vmem:[%s472 + $0x9] sm:$0xff] %vm330, %v430
          %475 = vst.msk [vmem:[%s472 + $0x11] sm:$0xff] %vm330, %v432
          %476 = vst.msk [vmem:[%s472 + $0x19] sm:$0xff] %vm330, %v434
          %477 = vst.msk [vmem:[%s472 + $0x21] sm:$0xff] %vm330, %v436
          %478 = vst.msk [vmem:[%s472 + $0x29] sm:$0xff] %vm330, %v438
          %479 = vst.msk [vmem:[%s472 + $0x31] sm:$0xff] %vm330, %v440
          %480 = vst.msk [vmem:[%s472 + $0x39] sm:$0xff] %vm330, %v442
          %481 = vst.msk [vmem:[%s472 + $0x41] sm:$0xff] %vm330, %v444
          %482 = vst.msk [vmem:[%s472 + $0x49] sm:$0xff] %vm330, %v446
          %483 = vst.msk [vmem:[%s472 + $0x51] sm:$0xff] %vm330, %v448
          %484 = vst.msk [vmem:[%s472 + $0x59] sm:$0xff] %vm330, %v450
          %485 = vst.msk [vmem:[%s472 + $0x61] sm:$0xff] %vm330, %v452
          %486 = vst.msk [vmem:[%s472 + $0x69] sm:$0xff] %vm330, %v454
          %487 = vst.msk [vmem:[%s472 + $0x71] sm:$0xff] %vm330, %v456
          %488 = vst.msk [vmem:[%s472] sm:$0x1] %vm346, 0.0
          %489 = vst.msk [vmem:[%s472 + $0x79] sm:$0x1] %vm346, 0.0
        $region44: #{tpu_custom_call.1} parent=31 // pred_fallthru
          _
        %s490 = smul.u32 %s24, 40
        %s491 = scalar_lea.vmem [#allocation2], %s490
        %v492 = vld [vmem:[%s491] sm:$0xff]
        %v493 = vld [vmem:[%s491 + $0x8] sm:$0xff]
        %v494 = vld [vmem:[%s491 + $0x10] sm:$0xff]
        %v495 = vld [vmem:[%s491 + $0x18] sm:$0xff]
        %s496 = sadd.s32 %s490, 128
        %s497 = scalar_lea.vmem [#allocation2], %s496
        %v498 = vld [vmem:[%s497] sm:$0xff]
        %v499 = vld [vmem:[%s497 + $0x8] sm:$0xff]
        %v500 = vld [vmem:[%s497 + $0x10] sm:$0xff]
        %v501 = vld [vmem:[%s497 + $0x18] sm:$0xff]
        %s502 = sadd.s32 %s490, 256
        %s503 = scalar_lea.vmem [#allocation2], %s502
        %v504 = vld [vmem:[%s503] sm:$0xff]
        %v505 = vld [vmem:[%s503 + $0x8] sm:$0xff]
        %v506 = vld [vmem:[%s503 + $0x10] sm:$0xff]
        %v507 = vld [vmem:[%s503 + $0x18] sm:$0xff]
        %s508 = sadd.s32 %s490, 1
        %s509 = scalar_lea.vmem [#allocation2], %s508
        %v510 = vld [vmem:[%s509] sm:$0xff]
        %v511 = vld [vmem:[%s509 + $0x8] sm:$0xff]
        %v512 = vld [vmem:[%s509 + $0x10] sm:$0xff]
        %v513 = vld [vmem:[%s509 + $0x18] sm:$0xff]
        %s514 = sadd.s32 %s508, 128
        %s515 = scalar_lea.vmem [#allocation2], %s514
        %v516 = vld [vmem:[%s515] sm:$0xff]
        %v517 = vld [vmem:[%s515 + $0x8] sm:$0xff]
        %v518 = vld [vmem:[%s515 + $0x10] sm:$0xff]
        %v519 = vld [vmem:[%s515 + $0x18] sm:$0xff]
        %s520 = sadd.s32 %s508, 256
        %s521 = scalar_lea.vmem [#allocation2], %s520
        %v522 = vld [vmem:[%s521] sm:$0xff]
        %v523 = vld [vmem:[%s521 + $0x8] sm:$0xff]
        %v524 = vld [vmem:[%s521 + $0x10] sm:$0xff]
        %v525 = vld [vmem:[%s521 + $0x18] sm:$0xff]
        %s526 = sadd.s32 %s490, 2
        %s527 = scalar_lea.vmem [#allocation2], %s526
        %v528 = vld [vmem:[%s527] sm:$0xff]
        %v529 = vld [vmem:[%s527 + $0x8] sm:$0xff]
        %v530 = vld [vmem:[%s527 + $0x10] sm:$0xff]
        %v531 = vld [vmem:[%s527 + $0x18] sm:$0xff]
        %s532 = sadd.s32 %s526, 128
        %s533 = scalar_lea.vmem [#allocation2], %s532
        %v534 = vld [vmem:[%s533] sm:$0xff]
        %v535 = vld [vmem:[%s533 + $0x8] sm:$0xff]
        %v536 = vld [vmem:[%s533 + $0x10] sm:$0xff]
        %v537 = vld [vmem:[%s533 + $0x18] sm:$0xff]
        %s538 = sadd.s32 %s526, 256
        %s539 = scalar_lea.vmem [#allocation2], %s538
        %v540 = vld [vmem:[%s539] sm:$0xff]
        %v541 = vld [vmem:[%s539 + $0x8] sm:$0xff]
        %v542 = vld [vmem:[%s539 + $0x10] sm:$0xff]
        %v543 = vld [vmem:[%s539 + $0x18] sm:$0xff]
        %s544 = sld [smem:[#allocation3]]
        %v545 = vstv %s544
        %v546 = vmul.f32 %v492, %v545
        %v547 = vmul.f32 %v493, %v545
        %v548 = vmul.f32 %v494, %v545
        %v549 = vmul.f32 %v495, %v545
        %s550 = sld [smem:[#allocation3 + $0x1]]
        %v551 = vstv %s550
        %v552 = vmul.f32 %v498, %v551
        %v553 = vmul.f32 %v499, %v551
        %v554 = vmul.f32 %v500, %v551
        %v555 = vmul.f32 %v501, %v551
        %v556 = vadd.f32 %v546, %v552
        %v557 = vadd.f32 %v547, %v553
        %v558 = vadd.f32 %v548, %v554
        %v559 = vadd.f32 %v549, %v555
        %s560 = sld [smem:[#allocation3 + $0x2]]
        %v561 = vstv %s560
        %v562 = vmul.f32 %v504, %v561
        %v563 = vmul.f32 %v505, %v561
        %v564 = vmul.f32 %v506, %v561
        %v565 = vmul.f32 %v507, %v561
        %v566 = vadd.f32 %v556, %v562
        %v567 = vadd.f32 %v557, %v563
        %v568 = vadd.f32 %v558, %v564
        %v569 = vadd.f32 %v559, %v565
        %s570 = sld [smem:[#allocation3 + $0x3]]
        %v571 = vstv %s570
        %v572 = vmul.f32 %v510, %v571
        %v573 = vmul.f32 %v511, %v571
        %v574 = vmul.f32 %v512, %v571
        %v575 = vmul.f32 %v513, %v571
        %v576 = vadd.f32 %v566, %v572
        %v577 = vadd.f32 %v567, %v573
        %v578 = vadd.f32 %v568, %v574
        %v579 = vadd.f32 %v569, %v575
        %s580 = sld [smem:[#allocation3 + $0x4]]
        %v581 = vstv %s580
        %v582 = vmul.f32 %v516, %v581
        %v583 = vmul.f32 %v517, %v581
        %v584 = vmul.f32 %v518, %v581
        %v585 = vmul.f32 %v519, %v581
        %v586 = vadd.f32 %v576, %v582
        %v587 = vadd.f32 %v577, %v583
        %v588 = vadd.f32 %v578, %v584
        %v589 = vadd.f32 %v579, %v585
        %s590 = sld [smem:[#allocation3 + $0x5]]
        %v591 = vstv %s590
        %v592 = vmul.f32 %v522, %v591
        %v593 = vmul.f32 %v523, %v591
        %v594 = vmul.f32 %v524, %v591
        %v595 = vmul.f32 %v525, %v591
        %v596 = vadd.f32 %v586, %v592
        %v597 = vadd.f32 %v587, %v593
        %v598 = vadd.f32 %v588, %v594
        %v599 = vadd.f32 %v589, %v595
        %s600 = sld [smem:[#allocation3 + $0x6]]
        %v601 = vstv %s600
        %v602 = vmul.f32 %v528, %v601
        %v603 = vmul.f32 %v529, %v601
        %v604 = vmul.f32 %v530, %v601
        %v605 = vmul.f32 %v531, %v601
        %v606 = vadd.f32 %v596, %v602
        %v607 = vadd.f32 %v597, %v603
        %v608 = vadd.f32 %v598, %v604
        %v609 = vadd.f32 %v599, %v605
        %s610 = sld [smem:[#allocation3 + $0x7]]
        %v611 = vstv %s610
        %v612 = vmul.f32 %v534, %v611
        %v613 = vmul.f32 %v535, %v611
        %v614 = vmul.f32 %v536, %v611
        %v615 = vmul.f32 %v537, %v611
        %v616 = vadd.f32 %v606, %v612
        %v617 = vadd.f32 %v607, %v613
        %v618 = vadd.f32 %v608, %v614
        %v619 = vadd.f32 %v609, %v615
        %s620 = sld [smem:[#allocation3 + $0x8]]
        %v621 = vstv %s620
        %v622 = vmul.f32 %v540, %v621
        %v623 = vmul.f32 %v541, %v621
        %v624 = vmul.f32 %v542, %v621
        %v625 = vmul.f32 %v543, %v621
        %v626 = vadd.f32 %v616, %v622
        %v627 = vadd.f32 %v617, %v623
        %v628 = vadd.f32 %v618, %v624
        %v629 = vadd.f32 %v619, %v625
        %s630 = sld [smem:[#allocation6]]
        %v631 = vstv %s630
        %v632 = vadd.f32 %v626, %v631
        %v633 = vadd.f32 %v627, %v631
        %v634 = vadd.f32 %v628, %v631
        %v635 = vadd.f32 %v629, %v631
        %vm636 = vcmask 1031168
        %637 = vst.msk [vmem:[%s204] sm:$0xff] %vm636, %v632
        %638 = vst.msk [vmem:[%s204 + $0x8] sm:$0xff] %vm636, %v633
        %639 = vst.msk [vmem:[%s204 + $0x10] sm:$0xff] %vm636, %v634
        %640 = vst.msk [vmem:[%s204 + $0x18] sm:$0xff] %vm636, %v635
        %s641 = sld [smem:[#allocation3 + $0x9]]
        %v642 = vstv %s641
        %v643 = vmul.f32 %v492, %v642
        %v644 = vmul.f32 %v493, %v642
        %v645 = vmul.f32 %v494, %v642
        %v646 = vmul.f32 %v495, %v642
        %s647 = sld [smem:[#allocation3 + $0xa]]
        %v648 = vstv %s647
        %v649 = vmul.f32 %v498, %v648
        %v650 = vmul.f32 %v499, %v648
        %v651 = vmul.f32 %v500, %v648
        %v652 = vmul.f32 %v501, %v648
        %v653 = vadd.f32 %v643, %v649
        %v654 = vadd.f32 %v644, %v650
        %v655 = vadd.f32 %v645, %v651
        %v656 = vadd.f32 %v646, %v652
        %s657 = sld [smem:[#allocation3 + $0xb]]
        %v658 = vstv %s657
        %v659 = vmul.f32 %v504, %v658
        %v660 = vmul.f32 %v505, %v658
        %v661 = vmul.f32 %v506, %v658
        %v662 = vmul.f32 %v507, %v658
        %v663 = vadd.f32 %v653, %v659
        %v664 = vadd.f32 %v654, %v660
        %v665 = vadd.f32 %v655, %v661
        %v666 = vadd.f32 %v656, %v662
        %s667 = sld [smem:[#allocation3 + $0xc]]
        %v668 = vstv %s667
        %v669 = vmul.f32 %v510, %v668
        %v670 = vmul.f32 %v511, %v668
        %v671 = vmul.f32 %v512, %v668
        %v672 = vmul.f32 %v513, %v668
        %v673 = vadd.f32 %v663, %v669
        %v674 = vadd.f32 %v664, %v670
        %v675 = vadd.f32 %v665, %v671
        %v676 = vadd.f32 %v666, %v672
        %s677 = sld [smem:[#allocation3 + $0xd]]
        %v678 = vstv %s677
        %v679 = vmul.f32 %v516, %v678
        %v680 = vmul.f32 %v517, %v678
        %v681 = vmul.f32 %v518, %v678
        %v682 = vmul.f32 %v519, %v678
        %v683 = vadd.f32 %v673, %v679
        %v684 = vadd.f32 %v674, %v680
        %v685 = vadd.f32 %v675, %v681
        %v686 = vadd.f32 %v676, %v682
        %s687 = sld [smem:[#allocation3 + $0xe]]
        %v688 = vstv %s687
        %v689 = vmul.f32 %v522, %v688
        %v690 = vmul.f32 %v523, %v688
        %v691 = vmul.f32 %v524, %v688
        %v692 = vmul.f32 %v525, %v688
        %v693 = vadd.f32 %v683, %v689
        %v694 = vadd.f32 %v684, %v690
        %v695 = vadd.f32 %v685, %v691
        %v696 = vadd.f32 %v686, %v692
        %s697 = sld [smem:[#allocation3 + $0xf]]
        %v698 = vstv %s697
        %v699 = vmul.f32 %v528, %v698
        %v700 = vmul.f32 %v529, %v698
        %v701 = vmul.f32 %v530, %v698
        %v702 = vmul.f32 %v531, %v698
        %v703 = vadd.f32 %v693, %v699
        %v704 = vadd.f32 %v694, %v700
        %v705 = vadd.f32 %v695, %v701
        %v706 = vadd.f32 %v696, %v702
        %s707 = sld [smem:[#allocation3 + $0x10]]
        %v708 = vstv %s707
        %v709 = vmul.f32 %v534, %v708
        %v710 = vmul.f32 %v535, %v708
        %v711 = vmul.f32 %v536, %v708
        %v712 = vmul.f32 %v537, %v708
        %v713 = vadd.f32 %v703, %v709
        %v714 = vadd.f32 %v704, %v710
        %v715 = vadd.f32 %v705, %v711
        %v716 = vadd.f32 %v706, %v712
        %s717 = sld [smem:[#allocation3 + $0x11]]
        %v718 = vstv %s717
        %v719 = vmul.f32 %v540, %v718
        %v720 = vmul.f32 %v541, %v718
        %v721 = vmul.f32 %v542, %v718
        %v722 = vmul.f32 %v543, %v718
        %v723 = vadd.f32 %v713, %v719
        %v724 = vadd.f32 %v714, %v720
        %v725 = vadd.f32 %v715, %v721
        %v726 = vadd.f32 %v716, %v722
        %s727 = sld [smem:[#allocation6 + $0x1]]
        %v728 = vstv %s727
        %v729 = vadd.f32 %v723, %v728
        %v730 = vadd.f32 %v724, %v728
        %v731 = vadd.f32 %v725, %v728
        %v732 = vadd.f32 %v726, %v728
        %s733 = scalar_lea.vmem %s204, 40 [#allocation8]
        %734 = vst.msk [vmem:[%s733] sm:$0xff] %vm636, %v729
        %735 = vst.msk [vmem:[%s733 + $0x8] sm:$0xff] %vm636, %v730
        %736 = vst.msk [vmem:[%s733 + $0x10] sm:$0xff] %vm636, %v731
        %737 = vst.msk [vmem:[%s733 + $0x18] sm:$0xff] %vm636, %v732
        %s738 = sld [smem:[#allocation3 + $0x12]]
        %v739 = vstv %s738
        %v740 = vmul.f32 %v492, %v739
        %v741 = vmul.f32 %v493, %v739
        %v742 = vmul.f32 %v494, %v739
        %v743 = vmul.f32 %v495, %v739
        %s744 = sld [smem:[#allocation3 + $0x13]]
        %v745 = vstv %s744
        %v746 = vmul.f32 %v498, %v745
        %v747 = vmul.f32 %v499, %v745
        %v748 = vmul.f32 %v500, %v745
        %v749 = vmul.f32 %v501, %v745
        %v750 = vadd.f32 %v740, %v746
        %v751 = vadd.f32 %v741, %v747
        %v752 = vadd.f32 %v742, %v748
        %v753 = vadd.f32 %v743, %v749
        %s754 = sld [smem:[#allocation3 + $0x14]]
        %v755 = vstv %s754
        %v756 = vmul.f32 %v504, %v755
        %v757 = vmul.f32 %v505, %v755
        %v758 = vmul.f32 %v506, %v755
        %v759 = vmul.f32 %v507, %v755
        %v760 = vadd.f32 %v750, %v756
        %v761 = vadd.f32 %v751, %v757
        %v762 = vadd.f32 %v752, %v758
        %v763 = vadd.f32 %v753, %v759
        %s764 = sld [smem:[#allocation3 + $0x15]]
        %v765 = vstv %s764
        %v766 = vmul.f32 %v510, %v765
        %v767 = vmul.f32 %v511, %v765
        %v768 = vmul.f32 %v512, %v765
        %v769 = vmul.f32 %v513, %v765
        %v770 = vadd.f32 %v760, %v766
        %v771 = vadd.f32 %v761, %v767
        %v772 = vadd.f32 %v762, %v768
        %v773 = vadd.f32 %v763, %v769
        %s774 = sld [smem:[#allocation3 + $0x16]]
        %v775 = vstv %s774
        %v776 = vmul.f32 %v516, %v775
        %v777 = vmul.f32 %v517, %v775
        %v778 = vmul.f32 %v518, %v775
        %v779 = vmul.f32 %v519, %v775
        %v780 = vadd.f32 %v770, %v776
        %v781 = vadd.f32 %v771, %v777
        %v782 = vadd.f32 %v772, %v778
        %v783 = vadd.f32 %v773, %v779
        %s784 = sld [smem:[#allocation3 + $0x17]]
        %v785 = vstv %s784
        %v786 = vmul.f32 %v522, %v785
        %v787 = vmul.f32 %v523, %v785
        %v788 = vmul.f32 %v524, %v785
        %v789 = vmul.f32 %v525, %v785
        %v790 = vadd.f32 %v780, %v786
        %v791 = vadd.f32 %v781, %v787
        %v792 = vadd.f32 %v782, %v788
        %v793 = vadd.f32 %v783, %v789
        %s794 = sld [smem:[#allocation3 + $0x18]]
        %v795 = vstv %s794
        %v796 = vmul.f32 %v528, %v795
        %v797 = vmul.f32 %v529, %v795
        %v798 = vmul.f32 %v530, %v795
        %v799 = vmul.f32 %v531, %v795
        %v800 = vadd.f32 %v790, %v796
        %v801 = vadd.f32 %v791, %v797
        %v802 = vadd.f32 %v792, %v798
        %v803 = vadd.f32 %v793, %v799
        %s804 = sld [smem:[#allocation3 + $0x19]]
        %v805 = vstv %s804
        %v806 = vmul.f32 %v534, %v805
        %v807 = vmul.f32 %v535, %v805
        %v808 = vmul.f32 %v536, %v805
        %v809 = vmul.f32 %v537, %v805
        %v810 = vadd.f32 %v800, %v806
        %v811 = vadd.f32 %v801, %v807
        %v812 = vadd.f32 %v802, %v808
        %v813 = vadd.f32 %v803, %v809
        %s814 = sld [smem:[#allocation3 + $0x1a]]
        %v815 = vstv %s814
        %v816 = vmul.f32 %v540, %v815
        %v817 = vmul.f32 %v541, %v815
        %v818 = vmul.f32 %v542, %v815
        %v819 = vmul.f32 %v543, %v815
        %v820 = vadd.f32 %v810, %v816
        %v821 = vadd.f32 %v811, %v817
        %v822 = vadd.f32 %v812, %v818
        %v823 = vadd.f32 %v813, %v819
        %s824 = sld [smem:[#allocation6 + $0x2]]
        %v825 = vstv %s824
        %v826 = vadd.f32 %v820, %v825
        %v827 = vadd.f32 %v821, %v825
        %v828 = vadd.f32 %v822, %v825
        %v829 = vadd.f32 %v823, %v825
        %s830 = scalar_lea.vmem %s204, 80 [#allocation8]
        %831 = vst.msk [vmem:[%s830] sm:$0xff] %vm636, %v826
        %832 = vst.msk [vmem:[%s830 + $0x8] sm:$0xff] %vm636, %v827
        %833 = vst.msk [vmem:[%s830 + $0x10] sm:$0xff] %vm636, %v828
        %834 = vst.msk [vmem:[%s830 + $0x18] sm:$0xff] %vm636, %v829
        %s835 = sld [smem:[#allocation3 + $0x1b]]
        %v836 = vstv %s835
        %v837 = vmul.f32 %v492, %v836
        %v838 = vmul.f32 %v493, %v836
        %v839 = vmul.f32 %v494, %v836
        %v840 = vmul.f32 %v495, %v836
        %s841 = sld [smem:[#allocation3 + $0x1c]]
        %v842 = vstv %s841
        %v843 = vmul.f32 %v498, %v842
        %v844 = vmul.f32 %v499, %v842
        %v845 = vmul.f32 %v500, %v842
        %v846 = vmul.f32 %v501, %v842
        %v847 = vadd.f32 %v837, %v843
        %v848 = vadd.f32 %v838, %v844
        %v849 = vadd.f32 %v839, %v845
        %v850 = vadd.f32 %v840, %v846
        %s851 = sld [smem:[#allocation3 + $0x1d]]
        %v852 = vstv %s851
        %v853 = vmul.f32 %v504, %v852
        %v854 = vmul.f32 %v505, %v852
        %v855 = vmul.f32 %v506, %v852
        %v856 = vmul.f32 %v507, %v852
        %v857 = vadd.f32 %v847, %v853
        %v858 = vadd.f32 %v848, %v854
        %v859 = vadd.f32 %v849, %v855
        %v860 = vadd.f32 %v850, %v856
        %s861 = sld [smem:[#allocation3 + $0x1e]]
        %v862 = vstv %s861
        %v863 = vmul.f32 %v510, %v862
        %v864 = vmul.f32 %v511, %v862
        %v865 = vmul.f32 %v512, %v862
        %v866 = vmul.f32 %v513, %v862
        %v867 = vadd.f32 %v857, %v863
        %v868 = vadd.f32 %v858, %v864
        %v869 = vadd.f32 %v859, %v865
        %v870 = vadd.f32 %v860, %v866
        %s871 = sld [smem:[#allocation3 + $0x1f]]
        %v872 = vstv %s871
        %v873 = vmul.f32 %v516, %v872
        %v874 = vmul.f32 %v517, %v872
        %v875 = vmul.f32 %v518, %v872
        %v876 = vmul.f32 %v519, %v872
        %v877 = vadd.f32 %v867, %v873
        %v878 = vadd.f32 %v868, %v874
        %v879 = vadd.f32 %v869, %v875
        %v880 = vadd.f32 %v870, %v876
        %s881 = sld [smem:[#allocation3 + $0x20]]
        %v882 = vstv %s881
        %v883 = vmul.f32 %v522, %v882
        %v884 = vmul.f32 %v523, %v882
        %v885 = vmul.f32 %v524, %v882
        %v886 = vmul.f32 %v525, %v882
        %v887 = vadd.f32 %v877, %v883
        %v888 = vadd.f32 %v878, %v884
        %v889 = vadd.f32 %v879, %v885
        %v890 = vadd.f32 %v880, %v886
        %s891 = sld [smem:[#allocation3 + $0x21]]
        %v892 = vstv %s891
        %v893 = vmul.f32 %v528, %v892
        %v894 = vmul.f32 %v529, %v892
        %v895 = vmul.f32 %v530, %v892
        %v896 = vmul.f32 %v531, %v892
        %v897 = vadd.f32 %v887, %v893
        %v898 = vadd.f32 %v888, %v894
        %v899 = vadd.f32 %v889, %v895
        %v900 = vadd.f32 %v890, %v896
        %s901 = sld [smem:[#allocation3 + $0x22]]
        %v902 = vstv %s901
        %v903 = vmul.f32 %v534, %v902
        %v904 = vmul.f32 %v535, %v902
        %v905 = vmul.f32 %v536, %v902
        %v906 = vmul.f32 %v537, %v902
        %v907 = vadd.f32 %v897, %v903
        %v908 = vadd.f32 %v898, %v904
        %v909 = vadd.f32 %v899, %v905
        %v910 = vadd.f32 %v900, %v906
        %s911 = sld [smem:[#allocation3 + $0x23]]
        %v912 = vstv %s911
        %v913 = vmul.f32 %v540, %v912
        %v914 = vmul.f32 %v541, %v912
        %v915 = vmul.f32 %v542, %v912
        %v916 = vmul.f32 %v543, %v912
        %v917 = vadd.f32 %v907, %v913
        %v918 = vadd.f32 %v908, %v914
        %v919 = vadd.f32 %v909, %v915
        %v920 = vadd.f32 %v910, %v916
        %s921 = sld [smem:[#allocation6 + $0x3]]
        %v922 = vstv %s921
        %v923 = vadd.f32 %v917, %v922
        %v924 = vadd.f32 %v918, %v922
        %v925 = vadd.f32 %v919, %v922
        %v926 = vadd.f32 %v920, %v922
        %s927 = scalar_lea.vmem %s204, 120 [#allocation8]
        %928 = vst.msk [vmem:[%s927] sm:$0xff] %vm636, %v923
        %929 = vst.msk [vmem:[%s927 + $0x8] sm:$0xff] %vm636, %v924
        %930 = vst.msk [vmem:[%s927 + $0x10] sm:$0xff] %vm636, %v925
        %931 = vst.msk [vmem:[%s927 + $0x18] sm:$0xff] %vm636, %v926
        %s932 = sld [smem:[#allocation3 + $0x24]]
        %v933 = vstv %s932
        %v934 = vmul.f32 %v492, %v933
        %v935 = vmul.f32 %v493, %v933
        %v936 = vmul.f32 %v494, %v933
        %v937 = vmul.f32 %v495, %v933
        %s938 = sld [smem:[#allocation3 + $0x25]]
        %v939 = vstv %s938
        %v940 = vmul.f32 %v498, %v939
        %v941 = vmul.f32 %v499, %v939
        %v942 = vmul.f32 %v500, %v939
        %v943 = vmul.f32 %v501, %v939
        %v944 = vadd.f32 %v934, %v940
        %v945 = vadd.f32 %v935, %v941
        %v946 = vadd.f32 %v936, %v942
        %v947 = vadd.f32 %v937, %v943
        %s948 = sld [smem:[#allocation3 + $0x26]]
        %v949 = vstv %s948
        %v950 = vmul.f32 %v504, %v949
        %v951 = vmul.f32 %v505, %v949
        %v952 = vmul.f32 %v506, %v949
        %v953 = vmul.f32 %v507, %v949
        %v954 = vadd.f32 %v944, %v950
        %v955 = vadd.f32 %v945, %v951
        %v956 = vadd.f32 %v946, %v952
        %v957 = vadd.f32 %v947, %v953
        %s958 = sld [smem:[#allocation3 + $0x27]]
        %v959 = vstv %s958
        %v960 = vmul.f32 %v510, %v959
        %v961 = vmul.f32 %v511, %v959
        %v962 = vmul.f32 %v512, %v959
        %v963 = vmul.f32 %v513, %v959
        %v964 = vadd.f32 %v954, %v960
        %v965 = vadd.f32 %v955, %v961
        %v966 = vadd.f32 %v956, %v962
        %v967 = vadd.f32 %v957, %v963
        %s968 = sld [smem:[#allocation3 + $0x28]]
        %v969 = vstv %s968
        %v970 = vmul.f32 %v516, %v969
        %v971 = vmul.f32 %v517, %v969
        %v972 = vmul.f32 %v518, %v969
        %v973 = vmul.f32 %v519, %v969
        %v974 = vadd.f32 %v964, %v970
        %v975 = vadd.f32 %v965, %v971
        %v976 = vadd.f32 %v966, %v972
        %v977 = vadd.f32 %v967, %v973
        %s978 = sld [smem:[#allocation3 + $0x29]]
        %v979 = vstv %s978
        %v980 = vmul.f32 %v522, %v979
        %v981 = vmul.f32 %v523, %v979
        %v982 = vmul.f32 %v524, %v979
        %v983 = vmul.f32 %v525, %v979
        %v984 = vadd.f32 %v974, %v980
        %v985 = vadd.f32 %v975, %v981
        %v986 = vadd.f32 %v976, %v982
        %v987 = vadd.f32 %v977, %v983
        %s988 = sld [smem:[#allocation3 + $0x2a]]
        %v989 = vstv %s988
        %v990 = vmul.f32 %v528, %v989
        %v991 = vmul.f32 %v529, %v989
        %v992 = vmul.f32 %v530, %v989
        %v993 = vmul.f32 %v531, %v989
        %v994 = vadd.f32 %v984, %v990
        %v995 = vadd.f32 %v985, %v991
        %v996 = vadd.f32 %v986, %v992
        %v997 = vadd.f32 %v987, %v993
        %s998 = sld [smem:[#allocation3 + $0x2b]]
        %v999 = vstv %s998
        %v1000 = vmul.f32 %v534, %v999
        %v1001 = vmul.f32 %v535, %v999
        %v1002 = vmul.f32 %v536, %v999
        %v1003 = vmul.f32 %v537, %v999
        %v1004 = vadd.f32 %v994, %v1000
        %v1005 = vadd.f32 %v995, %v1001
        %v1006 = vadd.f32 %v996, %v1002
        %v1007 = vadd.f32 %v997, %v1003
        %s1008 = sld [smem:[#allocation3 + $0x2c]]
        %v1009 = vstv %s1008
        %v1010 = vmul.f32 %v540, %v1009
        %v1011 = vmul.f32 %v541, %v1009
        %v1012 = vmul.f32 %v542, %v1009
        %v1013 = vmul.f32 %v543, %v1009
        %v1014 = vadd.f32 %v1004, %v1010
        %v1015 = vadd.f32 %v1005, %v1011
        %v1016 = vadd.f32 %v1006, %v1012
        %v1017 = vadd.f32 %v1007, %v1013
        %s1018 = sld [smem:[#allocation6 + $0x4]]
        %v1019 = vstv %s1018
        %v1020 = vadd.f32 %v1014, %v1019
        %v1021 = vadd.f32 %v1015, %v1019
        %v1022 = vadd.f32 %v1016, %v1019
        %v1023 = vadd.f32 %v1017, %v1019
        %s1024 = scalar_lea.vmem %s204, 160 [#allocation8]
        %1025 = vst.msk [vmem:[%s1024] sm:$0xff] %vm636, %v1020
        %1026 = vst.msk [vmem:[%s1024 + $0x8] sm:$0xff] %vm636, %v1021
        %1027 = vst.msk [vmem:[%s1024 + $0x10] sm:$0xff] %vm636, %v1022
        %1028 = vst.msk [vmem:[%s1024 + $0x18] sm:$0xff] %vm636, %v1023
        %s1029 = sld [smem:[#allocation3 + $0x2d]]
        %v1030 = vstv %s1029
        %v1031 = vmul.f32 %v492, %v1030
        %v1032 = vmul.f32 %v493, %v1030
        %v1033 = vmul.f32 %v494, %v1030
        %v1034 = vmul.f32 %v495, %v1030
        %s1035 = sld [smem:[#allocation3 + $0x2e]]
        %v1036 = vstv %s1035
        %v1037 = vmul.f32 %v498, %v1036
        %v1038 = vmul.f32 %v499, %v1036
        %v1039 = vmul.f32 %v500, %v1036
        %v1040 = vmul.f32 %v501, %v1036
        %v1041 = vadd.f32 %v1031, %v1037
        %v1042 = vadd.f32 %v1032, %v1038
        %v1043 = vadd.f32 %v1033, %v1039
        %v1044 = vadd.f32 %v1034, %v1040
        %s1045 = sld [smem:[#allocation3 + $0x2f]]
        %v1046 = vstv %s1045
        %v1047 = vmul.f32 %v504, %v1046
        %v1048 = vmul.f32 %v505, %v1046
        %v1049 = vmul.f32 %v506, %v1046
        %v1050 = vmul.f32 %v507, %v1046
        %v1051 = vadd.f32 %v1041, %v1047
        %v1052 = vadd.f32 %v1042, %v1048
        %v1053 = vadd.f32 %v1043, %v1049
        %v1054 = vadd.f32 %v1044, %v1050
        %s1055 = sld [smem:[#allocation3 + $0x30]]
        %v1056 = vstv %s1055
        %v1057 = vmul.f32 %v510, %v1056
        %v1058 = vmul.f32 %v511, %v1056
        %v1059 = vmul.f32 %v512, %v1056
        %v1060 = vmul.f32 %v513, %v1056
        %v1061 = vadd.f32 %v1051, %v1057
        %v1062 = vadd.f32 %v1052, %v1058
        %v1063 = vadd.f32 %v1053, %v1059
        %v1064 = vadd.f32 %v1054, %v1060
        %s1065 = sld [smem:[#allocation3 + $0x31]]
        %v1066 = vstv %s1065
        %v1067 = vmul.f32 %v516, %v1066
        %v1068 = vmul.f32 %v517, %v1066
        %v1069 = vmul.f32 %v518, %v1066
        %v1070 = vmul.f32 %v519, %v1066
        %v1071 = vadd.f32 %v1061, %v1067
        %v1072 = vadd.f32 %v1062, %v1068
        %v1073 = vadd.f32 %v1063, %v1069
        %v1074 = vadd.f32 %v1064, %v1070
        %s1075 = sld [smem:[#allocation3 + $0x32]]
        %v1076 = vstv %s1075
        %v1077 = vmul.f32 %v522, %v1076
        %v1078 = vmul.f32 %v523, %v1076
        %v1079 = vmul.f32 %v524, %v1076
        %v1080 = vmul.f32 %v525, %v1076
        %v1081 = vadd.f32 %v1071, %v1077
        %v1082 = vadd.f32 %v1072, %v1078
        %v1083 = vadd.f32 %v1073, %v1079
        %v1084 = vadd.f32 %v1074, %v1080
        %s1085 = sld [smem:[#allocation3 + $0x33]]
        %v1086 = vstv %s1085
        %v1087 = vmul.f32 %v528, %v1086
        %v1088 = vmul.f32 %v529, %v1086
        %v1089 = vmul.f32 %v530, %v1086
        %v1090 = vmul.f32 %v531, %v1086
        %v1091 = vadd.f32 %v1081, %v1087
        %v1092 = vadd.f32 %v1082, %v1088
        %v1093 = vadd.f32 %v1083, %v1089
        %v1094 = vadd.f32 %v1084, %v1090
        %s1095 = sld [smem:[#allocation3 + $0x34]]
        %v1096 = vstv %s1095
        %v1097 = vmul.f32 %v534, %v1096
        %v1098 = vmul.f32 %v535, %v1096
        %v1099 = vmul.f32 %v536, %v1096
        %v1100 = vmul.f32 %v537, %v1096
        %v1101 = vadd.f32 %v1091, %v1097
        %v1102 = vadd.f32 %v1092, %v1098
        %v1103 = vadd.f32 %v1093, %v1099
        %v1104 = vadd.f32 %v1094, %v1100
        %s1105 = sld [smem:[#allocation3 + $0x35]]
        %v1106 = vstv %s1105
        %v1107 = vmul.f32 %v540, %v1106
        %v1108 = vmul.f32 %v541, %v1106
        %v1109 = vmul.f32 %v542, %v1106
        %v1110 = vmul.f32 %v543, %v1106
        %v1111 = vadd.f32 %v1101, %v1107
        %v1112 = vadd.f32 %v1102, %v1108
        %v1113 = vadd.f32 %v1103, %v1109
        %v1114 = vadd.f32 %v1104, %v1110
        %s1115 = sld [smem:[#allocation6 + $0x5]]
        %v1116 = vstv %s1115
        %v1117 = vadd.f32 %v1111, %v1116
        %v1118 = vadd.f32 %v1112, %v1116
        %v1119 = vadd.f32 %v1113, %v1116
        %v1120 = vadd.f32 %v1114, %v1116
        %s1121 = scalar_lea.vmem %s204, 200 [#allocation8]
        %1122 = vst.msk [vmem:[%s1121] sm:$0xff] %vm636, %v1117
        %1123 = vst.msk [vmem:[%s1121 + $0x8] sm:$0xff] %vm636, %v1118
        %1124 = vst.msk [vmem:[%s1121 + $0x10] sm:$0xff] %vm636, %v1119
        %1125 = vst.msk [vmem:[%s1121 + $0x18] sm:$0xff] %vm636, %v1120
        %s1126 = sld [smem:[#allocation3 + $0x36]]
        %v1127 = vstv %s1126
        %v1128 = vmul.f32 %v492, %v1127
        %v1129 = vmul.f32 %v493, %v1127
        %v1130 = vmul.f32 %v494, %v1127
        %v1131 = vmul.f32 %v495, %v1127
        %s1132 = sld [smem:[#allocation3 + $0x37]]
        %v1133 = vstv %s1132
        %v1134 = vmul.f32 %v498, %v1133
        %v1135 = vmul.f32 %v499, %v1133
        %v1136 = vmul.f32 %v500, %v1133
        %v1137 = vmul.f32 %v501, %v1133
        %v1138 = vadd.f32 %v1128, %v1134
        %v1139 = vadd.f32 %v1129, %v1135
        %v1140 = vadd.f32 %v1130, %v1136
        %v1141 = vadd.f32 %v1131, %v1137
        %s1142 = sld [smem:[#allocation3 + $0x38]]
        %v1143 = vstv %s1142
        %v1144 = vmul.f32 %v504, %v1143
        %v1145 = vmul.f32 %v505, %v1143
        %v1146 = vmul.f32 %v506, %v1143
        %v1147 = vmul.f32 %v507, %v1143
        %v1148 = vadd.f32 %v1138, %v1144
        %v1149 = vadd.f32 %v1139, %v1145
        %v1150 = vadd.f32 %v1140, %v1146
        %v1151 = vadd.f32 %v1141, %v1147
        %s1152 = sld [smem:[#allocation3 + $0x39]]
        %v1153 = vstv %s1152
        %v1154 = vmul.f32 %v510, %v1153
        %v1155 = vmul.f32 %v511, %v1153
        %v1156 = vmul.f32 %v512, %v1153
        %v1157 = vmul.f32 %v513, %v1153
        %v1158 = vadd.f32 %v1148, %v1154
        %v1159 = vadd.f32 %v1149, %v1155
        %v1160 = vadd.f32 %v1150, %v1156
        %v1161 = vadd.f32 %v1151, %v1157
        %s1162 = sld [smem:[#allocation3 + $0x3a]]
        %v1163 = vstv %s1162
        %v1164 = vmul.f32 %v516, %v1163
        %v1165 = vmul.f32 %v517, %v1163
        %v1166 = vmul.f32 %v518, %v1163
        %v1167 = vmul.f32 %v519, %v1163
        %v1168 = vadd.f32 %v1158, %v1164
        %v1169 = vadd.f32 %v1159, %v1165
        %v1170 = vadd.f32 %v1160, %v1166
        %v1171 = vadd.f32 %v1161, %v1167
        %s1172 = sld [smem:[#allocation3 + $0x3b]]
        %v1173 = vstv %s1172
        %v1174 = vmul.f32 %v522, %v1173
        %v1175 = vmul.f32 %v523, %v1173
        %v1176 = vmul.f32 %v524, %v1173
        %v1177 = vmul.f32 %v525, %v1173
        %v1178 = vadd.f32 %v1168, %v1174
        %v1179 = vadd.f32 %v1169, %v1175
        %v1180 = vadd.f32 %v1170, %v1176
        %v1181 = vadd.f32 %v1171, %v1177
        %s1182 = sld [smem:[#allocation3 + $0x3c]]
        %v1183 = vstv %s1182
        %v1184 = vmul.f32 %v528, %v1183
        %v1185 = vmul.f32 %v529, %v1183
        %v1186 = vmul.f32 %v530, %v1183
        %v1187 = vmul.f32 %v531, %v1183
        %v1188 = vadd.f32 %v1178, %v1184
        %v1189 = vadd.f32 %v1179, %v1185
        %v1190 = vadd.f32 %v1180, %v1186
        %v1191 = vadd.f32 %v1181, %v1187
        %s1192 = sld [smem:[#allocation3 + $0x3d]]
        %v1193 = vstv %s1192
        %v1194 = vmul.f32 %v534, %v1193
        %v1195 = vmul.f32 %v535, %v1193
        %v1196 = vmul.f32 %v536, %v1193
        %v1197 = vmul.f32 %v537, %v1193
        %v1198 = vadd.f32 %v1188, %v1194
        %v1199 = vadd.f32 %v1189, %v1195
        %v1200 = vadd.f32 %v1190, %v1196
        %v1201 = vadd.f32 %v1191, %v1197
        %s1202 = sld [smem:[#allocation3 + $0x3e]]
        %v1203 = vstv %s1202
        %v1204 = vmul.f32 %v540, %v1203
        %v1205 = vmul.f32 %v541, %v1203
        %v1206 = vmul.f32 %v542, %v1203
        %v1207 = vmul.f32 %v543, %v1203
        %v1208 = vadd.f32 %v1198, %v1204
        %v1209 = vadd.f32 %v1199, %v1205
        %v1210 = vadd.f32 %v1200, %v1206
        %v1211 = vadd.f32 %v1201, %v1207
        %s1212 = sld [smem:[#allocation6 + $0x6]]
        %v1213 = vstv %s1212
        %v1214 = vadd.f32 %v1208, %v1213
        %v1215 = vadd.f32 %v1209, %v1213
        %v1216 = vadd.f32 %v1210, %v1213
        %v1217 = vadd.f32 %v1211, %v1213
        %s1218 = scalar_lea.vmem %s204, 240 [#allocation8]
        %1219 = vst.msk [vmem:[%s1218] sm:$0xff] %vm636, %v1214
        %1220 = vst.msk [vmem:[%s1218 + $0x8] sm:$0xff] %vm636, %v1215
        %1221 = vst.msk [vmem:[%s1218 + $0x10] sm:$0xff] %vm636, %v1216
        %1222 = vst.msk [vmem:[%s1218 + $0x18] sm:$0xff] %vm636, %v1217
        %s1223 = sld [smem:[#allocation3 + $0x3f]]
        %v1224 = vstv %s1223
        %v1225 = vmul.f32 %v492, %v1224
        %v1226 = vmul.f32 %v493, %v1224
        %v1227 = vmul.f32 %v494, %v1224
        %v1228 = vmul.f32 %v495, %v1224
        %s1229 = sld [smem:[#allocation3 + $0x40]]
        %v1230 = vstv %s1229
        %v1231 = vmul.f32 %v498, %v1230
        %v1232 = vmul.f32 %v499, %v1230
        %v1233 = vmul.f32 %v500, %v1230
        %v1234 = vmul.f32 %v501, %v1230
        %v1235 = vadd.f32 %v1225, %v1231
        %v1236 = vadd.f32 %v1226, %v1232
        %v1237 = vadd.f32 %v1227, %v1233
        %v1238 = vadd.f32 %v1228, %v1234
        %s1239 = sld [smem:[#allocation3 + $0x41]]
        %v1240 = vstv %s1239
        %v1241 = vmul.f32 %v504, %v1240
        %v1242 = vmul.f32 %v505, %v1240
        %v1243 = vmul.f32 %v506, %v1240
        %v1244 = vmul.f32 %v507, %v1240
        %v1245 = vadd.f32 %v1235, %v1241
        %v1246 = vadd.f32 %v1236, %v1242
        %v1247 = vadd.f32 %v1237, %v1243
        %v1248 = vadd.f32 %v1238, %v1244
        %s1249 = sld [smem:[#allocation3 + $0x42]]
        %v1250 = vstv %s1249
        %v1251 = vmul.f32 %v510, %v1250
        %v1252 = vmul.f32 %v511, %v1250
        %v1253 = vmul.f32 %v512, %v1250
        %v1254 = vmul.f32 %v513, %v1250
        %v1255 = vadd.f32 %v1245, %v1251
        %v1256 = vadd.f32 %v1246, %v1252
        %v1257 = vadd.f32 %v1247, %v1253
        %v1258 = vadd.f32 %v1248, %v1254
        %s1259 = sld [smem:[#allocation3 + $0x43]]
        %v1260 = vstv %s1259
        %v1261 = vmul.f32 %v516, %v1260
        %v1262 = vmul.f32 %v517, %v1260
        %v1263 = vmul.f32 %v518, %v1260
        %v1264 = vmul.f32 %v519, %v1260
        %v1265 = vadd.f32 %v1255, %v1261
        %v1266 = vadd.f32 %v1256, %v1262
        %v1267 = vadd.f32 %v1257, %v1263
        %v1268 = vadd.f32 %v1258, %v1264
        %s1269 = sld [smem:[#allocation3 + $0x44]]
        %v1270 = vstv %s1269
        %v1271 = vmul.f32 %v522, %v1270
        %v1272 = vmul.f32 %v523, %v1270
        %v1273 = vmul.f32 %v524, %v1270
        %v1274 = vmul.f32 %v525, %v1270
        %v1275 = vadd.f32 %v1265, %v1271
        %v1276 = vadd.f32 %v1266, %v1272
        %v1277 = vadd.f32 %v1267, %v1273
        %v1278 = vadd.f32 %v1268, %v1274
        %s1279 = sld [smem:[#allocation3 + $0x45]]
        %v1280 = vstv %s1279
        %v1281 = vmul.f32 %v528, %v1280
        %v1282 = vmul.f32 %v529, %v1280
        %v1283 = vmul.f32 %v530, %v1280
        %v1284 = vmul.f32 %v531, %v1280
        %v1285 = vadd.f32 %v1275, %v1281
        %v1286 = vadd.f32 %v1276, %v1282
        %v1287 = vadd.f32 %v1277, %v1283
        %v1288 = vadd.f32 %v1278, %v1284
        %s1289 = sld [smem:[#allocation3 + $0x46]]
        %v1290 = vstv %s1289
        %v1291 = vmul.f32 %v534, %v1290
        %v1292 = vmul.f32 %v535, %v1290
        %v1293 = vmul.f32 %v536, %v1290
        %v1294 = vmul.f32 %v537, %v1290
        %v1295 = vadd.f32 %v1285, %v1291
        %v1296 = vadd.f32 %v1286, %v1292
        %v1297 = vadd.f32 %v1287, %v1293
        %v1298 = vadd.f32 %v1288, %v1294
        %s1299 = sld [smem:[#allocation3 + $0x47]]
        %v1300 = vstv %s1299
        %v1301 = vmul.f32 %v540, %v1300
        %v1302 = vmul.f32 %v541, %v1300
        %v1303 = vmul.f32 %v542, %v1300
        %v1304 = vmul.f32 %v543, %v1300
        %v1305 = vadd.f32 %v1295, %v1301
        %v1306 = vadd.f32 %v1296, %v1302
        %v1307 = vadd.f32 %v1297, %v1303
        %v1308 = vadd.f32 %v1298, %v1304
        %s1309 = sld [smem:[#allocation6 + $0x7]]
        %v1310 = vstv %s1309
        %v1311 = vadd.f32 %v1305, %v1310
        %v1312 = vadd.f32 %v1306, %v1310
        %v1313 = vadd.f32 %v1307, %v1310
        %v1314 = vadd.f32 %v1308, %v1310
        %s1315 = scalar_lea.vmem %s204, 280 [#allocation8]
        %1316 = vst.msk [vmem:[%s1315] sm:$0xff] %vm636, %v1311
        %1317 = vst.msk [vmem:[%s1315 + $0x8] sm:$0xff] %vm636, %v1312
        %1318 = vst.msk [vmem:[%s1315 + $0x10] sm:$0xff] %vm636, %v1313
        %1319 = vst.msk [vmem:[%s1315 + $0x18] sm:$0xff] %vm636, %v1314
        %s1320 = sadd.s32 %s490, 32
        %s1321 = scalar_lea.vmem [#allocation2], %s1320
        %v1322 = vld [vmem:[%s1321] sm:$0xff]
        %s1323 = sadd.s32 %s1320, 128
        %s1324 = scalar_lea.vmem [#allocation2], %s1323
        %v1325 = vld [vmem:[%s1324] sm:$0xff]
        %s1326 = sadd.s32 %s1320, 256
        %s1327 = scalar_lea.vmem [#allocation2], %s1326
        %v1328 = vld [vmem:[%s1327] sm:$0xff]
        %s1329 = sadd.s32 %s490, 33
        %s1330 = scalar_lea.vmem [#allocation2], %s1329
        %v1331 = vld [vmem:[%s1330] sm:$0xff]
        %s1332 = sadd.s32 %s1329, 128
        %s1333 = scalar_lea.vmem [#allocation2], %s1332
        %v1334 = vld [vmem:[%s1333] sm:$0xff]
        %s1335 = sadd.s32 %s1329, 256
        %s1336 = scalar_lea.vmem [#allocation2], %s1335
        %v1337 = vld [vmem:[%s1336] sm:$0xff]
        %s1338 = sadd.s32 %s490, 34
        %s1339 = scalar_lea.vmem [#allocation2], %s1338
        %v1340 = vld [vmem:[%s1339] sm:$0xff]
        %s1341 = sadd.s32 %s1338, 128
        %s1342 = scalar_lea.vmem [#allocation2], %s1341
        %v1343 = vld [vmem:[%s1342] sm:$0xff]
        %s1344 = sadd.s32 %s1338, 256
        %s1345 = scalar_lea.vmem [#allocation2], %s1344
        %v1346 = vld [vmem:[%s1345] sm:$0xff]
        %s1347 = sld [smem:[#allocation3]]
        %v1348 = vstv %s1347
        %v1349 = vmul.f32 %v1322, %v1348
        %s1350 = sld [smem:[#allocation3 + $0x1]]
        %v1351 = vstv %s1350
        %v1352 = vmul.f32 %v1325, %v1351
        %v1353 = vadd.f32 %v1349, %v1352
        %s1354 = sld [smem:[#allocation3 + $0x2]]
        %v1355 = vstv %s1354
        %v1356 = vmul.f32 %v1328, %v1355
        %v1357 = vadd.f32 %v1353, %v1356
        %s1358 = sld [smem:[#allocation3 + $0x3]]
        %v1359 = vstv %s1358
        %v1360 = vmul.f32 %v1331, %v1359
        %v1361 = vadd.f32 %v1357, %v1360
        %s1362 = sld [smem:[#allocation3 + $0x4]]
        %v1363 = vstv %s1362
        %v1364 = vmul.f32 %v1334, %v1363
        %v1365 = vadd.f32 %v1361, %v1364
        %s1366 = sld [smem:[#allocation3 + $0x5]]
        %v1367 = vstv %s1366
        %v1368 = vmul.f32 %v1337, %v1367
        %v1369 = vadd.f32 %v1365, %v1368
        %s1370 = sld [smem:[#allocation3 + $0x6]]
        %v1371 = vstv %s1370
        %v1372 = vmul.f32 %v1340, %v1371
        %v1373 = vadd.f32 %v1369, %v1372
        %s1374 = sld [smem:[#allocation3 + $0x7]]
        %v1375 = vstv %s1374
        %v1376 = vmul.f32 %v1343, %v1375
        %v1377 = vadd.f32 %v1373, %v1376
        %s1378 = sld [smem:[#allocation3 + $0x8]]
        %v1379 = vstv %s1378
        %v1380 = vmul.f32 %v1346, %v1379
        %v1381 = vadd.f32 %v1377, %v1380
        %s1382 = sld [smem:[#allocation6]]
        %v1383 = vstv %s1382
        %v1384 = vadd.f32 %v1381, %v1383
        %1385 = vst.msk [vmem:[%s204 + $0x20] sm:$0xff] %vm636, %v1384
        %s1386 = sld [smem:[#allocation3 + $0x9]]
        %v1387 = vstv %s1386
        %v1388 = vmul.f32 %v1322, %v1387
        %s1389 = sld [smem:[#allocation3 + $0xa]]
        %v1390 = vstv %s1389
        %v1391 = vmul.f32 %v1325, %v1390
        %v1392 = vadd.f32 %v1388, %v1391
        %s1393 = sld [smem:[#allocation3 + $0xb]]
        %v1394 = vstv %s1393
        %v1395 = vmul.f32 %v1328, %v1394
        %v1396 = vadd.f32 %v1392, %v1395
        %s1397 = sld [smem:[#allocation3 + $0xc]]
        %v1398 = vstv %s1397
        %v1399 = vmul.f32 %v1331, %v1398
        %v1400 = vadd.f32 %v1396, %v1399
        %s1401 = sld [smem:[#allocation3 + $0xd]]
        %v1402 = vstv %s1401
        %v1403 = vmul.f32 %v1334, %v1402
        %v1404 = vadd.f32 %v1400, %v1403
        %s1405 = sld [smem:[#allocation3 + $0xe]]
        %v1406 = vstv %s1405
        %v1407 = vmul.f32 %v1337, %v1406
        %v1408 = vadd.f32 %v1404, %v1407
        %s1409 = sld [smem:[#allocation3 + $0xf]]
        %v1410 = vstv %s1409
        %v1411 = vmul.f32 %v1340, %v1410
        %v1412 = vadd.f32 %v1408, %v1411
        %s1413 = sld [smem:[#allocation3 + $0x10]]
        %v1414 = vstv %s1413
        %v1415 = vmul.f32 %v1343, %v1414
        %v1416 = vadd.f32 %v1412, %v1415
        %s1417 = sld [smem:[#allocation3 + $0x11]]
        %v1418 = vstv %s1417
        %v1419 = vmul.f32 %v1346, %v1418
        %v1420 = vadd.f32 %v1416, %v1419
        %s1421 = sld [smem:[#allocation6 + $0x1]]
        %v1422 = vstv %s1421
        %v1423 = vadd.f32 %v1420, %v1422
        %1424 = vst.msk [vmem:[%s733 + $0x20] sm:$0xff] %vm636, %v1423
        %s1425 = sld [smem:[#allocation3 + $0x12]]
        %v1426 = vstv %s1425
        %v1427 = vmul.f32 %v1322, %v1426
        %s1428 = sld [smem:[#allocation3 + $0x13]]
        %v1429 = vstv %s1428
        %v1430 = vmul.f32 %v1325, %v1429
        %v1431 = vadd.f32 %v1427, %v1430
        %s1432 = sld [smem:[#allocation3 + $0x14]]
        %v1433 = vstv %s1432
        %v1434 = vmul.f32 %v1328, %v1433
        %v1435 = vadd.f32 %v1431, %v1434
        %s1436 = sld [smem:[#allocation3 + $0x15]]
        %v1437 = vstv %s1436
        %v1438 = vmul.f32 %v1331, %v1437
        %v1439 = vadd.f32 %v1435, %v1438
        %s1440 = sld [smem:[#allocation3 + $0x16]]
        %v1441 = vstv %s1440
        %v1442 = vmul.f32 %v1334, %v1441
        %v1443 = vadd.f32 %v1439, %v1442
        %s1444 = sld [smem:[#allocation3 + $0x17]]
        %v1445 = vstv %s1444
        %v1446 = vmul.f32 %v1337, %v1445
        %v1447 = vadd.f32 %v1443, %v1446
        %s1448 = sld [smem:[#allocation3 + $0x18]]
        %v1449 = vstv %s1448
        %v1450 = vmul.f32 %v1340, %v1449
        %v1451 = vadd.f32 %v1447, %v1450
        %s1452 = sld [smem:[#allocation3 + $0x19]]
        %v1453 = vstv %s1452
        %v1454 = vmul.f32 %v1343, %v1453
        %v1455 = vadd.f32 %v1451, %v1454
        %s1456 = sld [smem:[#allocation3 + $0x1a]]
        %v1457 = vstv %s1456
        %v1458 = vmul.f32 %v1346, %v1457
        %v1459 = vadd.f32 %v1455, %v1458
        %s1460 = sld [smem:[#allocation6 + $0x2]]
        %v1461 = vstv %s1460
        %v1462 = vadd.f32 %v1459, %v1461
        %1463 = vst.msk [vmem:[%s830 + $0x20] sm:$0xff] %vm636, %v1462
        %s1464 = sld [smem:[#allocation3 + $0x1b]]
        %v1465 = vstv %s1464
        %v1466 = vmul.f32 %v1322, %v1465
        %s1467 = sld [smem:[#allocation3 + $0x1c]]
        %v1468 = vstv %s1467
        %v1469 = vmul.f32 %v1325, %v1468
        %v1470 = vadd.f32 %v1466, %v1469
        %s1471 = sld [smem:[#allocation3 + $0x1d]]
        %v1472 = vstv %s1471
        %v1473 = vmul.f32 %v1328, %v1472
        %v1474 = vadd.f32 %v1470, %v1473
        %s1475 = sld [smem:[#allocation3 + $0x1e]]
        %v1476 = vstv %s1475
        %v1477 = vmul.f32 %v1331, %v1476
        %v1478 = vadd.f32 %v1474, %v1477
        %s1479 = sld [smem:[#allocation3 + $0x1f]]
        %v1480 = vstv %s1479
        %v1481 = vmul.f32 %v1334, %v1480
        %v1482 = vadd.f32 %v1478, %v1481
        %s1483 = sld [smem:[#allocation3 + $0x20]]
        %v1484 = vstv %s1483
        %v1485 = vmul.f32 %v1337, %v1484
        %v1486 = vadd.f32 %v1482, %v1485
        %s1487 = sld [smem:[#allocation3 + $0x21]]
        %v1488 = vstv %s1487
        %v1489 = vmul.f32 %v1340, %v1488
        %v1490 = vadd.f32 %v1486, %v1489
        %s1491 = sld [smem:[#allocation3 + $0x22]]
        %v1492 = vstv %s1491
        %v1493 = vmul.f32 %v1343, %v1492
        %v1494 = vadd.f32 %v1490, %v1493
        %s1495 = sld [smem:[#allocation3 + $0x23]]
        %v1496 = vstv %s1495
        %v1497 = vmul.f32 %v1346, %v1496
        %v1498 = vadd.f32 %v1494, %v1497
        %s1499 = sld [smem:[#allocation6 + $0x3]]
        %v1500 = vstv %s1499
        %v1501 = vadd.f32 %v1498, %v1500
        %1502 = vst.msk [vmem:[%s927 + $0x20] sm:$0xff] %vm636, %v1501
        %s1503 = sld [smem:[#allocation3 + $0x24]]
        %v1504 = vstv %s1503
        %v1505 = vmul.f32 %v1322, %v1504
        %s1506 = sld [smem:[#allocation3 + $0x25]]
        %v1507 = vstv %s1506
        %v1508 = vmul.f32 %v1325, %v1507
        %v1509 = vadd.f32 %v1505, %v1508
        %s1510 = sld [smem:[#allocation3 + $0x26]]
        %v1511 = vstv %s1510
        %v1512 = vmul.f32 %v1328, %v1511
        %v1513 = vadd.f32 %v1509, %v1512
        %s1514 = sld [smem:[#allocation3 + $0x27]]
        %v1515 = vstv %s1514
        %v1516 = vmul.f32 %v1331, %v1515
        %v1517 = vadd.f32 %v1513, %v1516
        %s1518 = sld [smem:[#allocation3 + $0x28]]
        %v1519 = vstv %s1518
        %v1520 = vmul.f32 %v1334, %v1519
        %v1521 = vadd.f32 %v1517, %v1520
        %s1522 = sld [smem:[#allocation3 + $0x29]]
        %v1523 = vstv %s1522
        %v1524 = vmul.f32 %v1337, %v1523
        %v1525 = vadd.f32 %v1521, %v1524
        %s1526 = sld [smem:[#allocation3 + $0x2a]]
        %v1527 = vstv %s1526
        %v1528 = vmul.f32 %v1340, %v1527
        %v1529 = vadd.f32 %v1525, %v1528
        %s1530 = sld [smem:[#allocation3 + $0x2b]]
        %v1531 = vstv %s1530
        %v1532 = vmul.f32 %v1343, %v1531
        %v1533 = vadd.f32 %v1529, %v1532
        %s1534 = sld [smem:[#allocation3 + $0x2c]]
        %v1535 = vstv %s1534
        %v1536 = vmul.f32 %v1346, %v1535
        %v1537 = vadd.f32 %v1533, %v1536
        %s1538 = sld [smem:[#allocation6 + $0x4]]
        %v1539 = vstv %s1538
        %v1540 = vadd.f32 %v1537, %v1539
        %1541 = vst.msk [vmem:[%s1024 + $0x20] sm:$0xff] %vm636, %v1540
        %s1542 = sld [smem:[#allocation3 + $0x2d]]
        %v1543 = vstv %s1542
        %v1544 = vmul.f32 %v1322, %v1543
        %s1545 = sld [smem:[#allocation3 + $0x2e]]
        %v1546 = vstv %s1545
        %v1547 = vmul.f32 %v1325, %v1546
        %v1548 = vadd.f32 %v1544, %v1547
        %s1549 = sld [smem:[#allocation3 + $0x2f]]
        %v1550 = vstv %s1549
        %v1551 = vmul.f32 %v1328, %v1550
        %v1552 = vadd.f32 %v1548, %v1551
        %s1553 = sld [smem:[#allocation3 + $0x30]]
        %v1554 = vstv %s1553
        %v1555 = vmul.f32 %v1331, %v1554
        %v1556 = vadd.f32 %v1552, %v1555
        %s1557 = sld [smem:[#allocation3 + $0x31]]
        %v1558 = vstv %s1557
        %v1559 = vmul.f32 %v1334, %v1558
        %v1560 = vadd.f32 %v1556, %v1559
        %s1561 = sld [smem:[#allocation3 + $0x32]]
        %v1562 = vstv %s1561
        %v1563 = vmul.f32 %v1337, %v1562
        %v1564 = vadd.f32 %v1560, %v1563
        %s1565 = sld [smem:[#allocation3 + $0x33]]
        %v1566 = vstv %s1565
        %v1567 = vmul.f32 %v1340, %v1566
        %v1568 = vadd.f32 %v1564, %v1567
        %s1569 = sld [smem:[#allocation3 + $0x34]]
        %v1570 = vstv %s1569
        %v1571 = vmul.f32 %v1343, %v1570
        %v1572 = vadd.f32 %v1568, %v1571
        %s1573 = sld [smem:[#allocation3 + $0x35]]
        %v1574 = vstv %s1573
        %v1575 = vmul.f32 %v1346, %v1574
        %v1576 = vadd.f32 %v1572, %v1575
        %s1577 = sld [smem:[#allocation6 + $0x5]]
        %v1578 = vstv %s1577
        %v1579 = vadd.f32 %v1576, %v1578
        %1580 = vst.msk [vmem:[%s1121 + $0x20] sm:$0xff] %vm636, %v1579
        %s1581 = sld [smem:[#allocation3 + $0x36]]
        %v1582 = vstv %s1581
        %v1583 = vmul.f32 %v1322, %v1582
        %s1584 = sld [smem:[#allocation3 + $0x37]]
        %v1585 = vstv %s1584
        %v1586 = vmul.f32 %v1325, %v1585
        %v1587 = vadd.f32 %v1583, %v1586
        %s1588 = sld [smem:[#allocation3 + $0x38]]
        %v1589 = vstv %s1588
        %v1590 = vmul.f32 %v1328, %v1589
        %v1591 = vadd.f32 %v1587, %v1590
        %s1592 = sld [smem:[#allocation3 + $0x39]]
        %v1593 = vstv %s1592
        %v1594 = vmul.f32 %v1331, %v1593
        %v1595 = vadd.f32 %v1591, %v1594
        %s1596 = sld [smem:[#allocation3 + $0x3a]]
        %v1597 = vstv %s1596
        %v1598 = vmul.f32 %v1334, %v1597
        %v1599 = vadd.f32 %v1595, %v1598
        %s1600 = sld [smem:[#allocation3 + $0x3b]]
        %v1601 = vstv %s1600
        %v1602 = vmul.f32 %v1337, %v1601
        %v1603 = vadd.f32 %v1599, %v1602
        %s1604 = sld [smem:[#allocation3 + $0x3c]]
        %v1605 = vstv %s1604
        %v1606 = vmul.f32 %v1340, %v1605
        %v1607 = vadd.f32 %v1603, %v1606
        %s1608 = sld [smem:[#allocation3 + $0x3d]]
        %v1609 = vstv %s1608
        %v1610 = vmul.f32 %v1343, %v1609
        %v1611 = vadd.f32 %v1607, %v1610
        %s1612 = sld [smem:[#allocation3 + $0x3e]]
        %v1613 = vstv %s1612
        %v1614 = vmul.f32 %v1346, %v1613
        %v1615 = vadd.f32 %v1611, %v1614
        %s1616 = sld [smem:[#allocation6 + $0x6]]
        %v1617 = vstv %s1616
        %v1618 = vadd.f32 %v1615, %v1617
        %1619 = vst.msk [vmem:[%s1218 + $0x20] sm:$0xff] %vm636, %v1618
        %s1620 = sld [smem:[#allocation3 + $0x3f]]
        %v1621 = vstv %s1620
        %v1622 = vmul.f32 %v1322, %v1621
        %s1623 = sld [smem:[#allocation3 + $0x40]]
        %v1624 = vstv %s1623
        %v1625 = vmul.f32 %v1325, %v1624
        %v1626 = vadd.f32 %v1622, %v1625
        %s1627 = sld [smem:[#allocation3 + $0x41]]
        %v1628 = vstv %s1627
        %v1629 = vmul.f32 %v1328, %v1628
        %v1630 = vadd.f32 %v1626, %v1629
        %s1631 = sld [smem:[#allocation3 + $0x42]]
        %v1632 = vstv %s1631
        %v1633 = vmul.f32 %v1331, %v1632
        %v1634 = vadd.f32 %v1630, %v1633
        %s1635 = sld [smem:[#allocation3 + $0x43]]
        %v1636 = vstv %s1635
        %v1637 = vmul.f32 %v1334, %v1636
        %v1638 = vadd.f32 %v1634, %v1637
        %s1639 = sld [smem:[#allocation3 + $0x44]]
        %v1640 = vstv %s1639
        %v1641 = vmul.f32 %v1337, %v1640
        %v1642 = vadd.f32 %v1638, %v1641
        %s1643 = sld [smem:[#allocation3 + $0x45]]
        %v1644 = vstv %s1643
        %v1645 = vmul.f32 %v1340, %v1644
        %v1646 = vadd.f32 %v1642, %v1645
        %s1647 = sld [smem:[#allocation3 + $0x46]]
        %v1648 = vstv %s1647
        %v1649 = vmul.f32 %v1343, %v1648
        %v1650 = vadd.f32 %v1646, %v1649
        %s1651 = sld [smem:[#allocation3 + $0x47]]
        %v1652 = vstv %s1651
        %v1653 = vmul.f32 %v1346, %v1652
        %v1654 = vadd.f32 %v1650, %v1653
        %s1655 = sld [smem:[#allocation6 + $0x7]]
        %v1656 = vstv %s1655
        %v1657 = vadd.f32 %v1654, %v1656
        %1658 = vst.msk [vmem:[%s1315 + $0x20] sm:$0xff] %vm636, %v1657
        %s1659 = sand.u32 %s109, 1
        %s1660 = scalar_lea.sflag [#allocation4], %s1659
        %s1661 = sand.u32 %s109, 1
        %s1662 = smul.addr %s1661, 320
        %s1663 = scalar_lea.vmem [#allocation8], %s1662
        // Predicated region
        $region45: #{tpu_custom_call.1} parent=31 // pred_check
          %p1664 = pneg %p119
        $region46: #{tpu_custom_call.1} parent=31 // pred_check_branch
          %1666 = sbr.rel (%p1664) target = $region48
        $region47: #{tpu_custom_call.1} parent=31 // pred_region
          #allocation10 [shape = 'u32[6]{0}', space=smem, size = 0x18, scoped, tag = 'DMA stride descriptor']
          %s1667 = smul.u32 5, %s24
          %s1669 = ssub.s32 5120, 5120
          %1670 = vsyncadd %s1660, %s1669
          %s1671 = smul.addr %s23, 120
          %s1672 = sadd.s32 %s1667, %s1671
          %s1673 = smul.addr %s1672, 128
          %s1674 = scalar_lea.hbm %s3, %s1673
          %s1676 = sshll.u32 1, 14
          %s1677 = sxor.u32 4294967295, %s1676
          %s1680 = sshll.u32 7, 18
          %s1681 = sxor.u32 4294967295, %s1680
          %s1682 = sand.u32 0, %s1681
          %s1684 = sor.u32 %s1682, 0
          %s1686 = sshll.u32 3, 24
          %s1687 = sxor.u32 4294967295, %s1686
          %s1688 = sand.u32 %s1684, %s1687
          %s1690 = sor.u32 %s1688, 0
          %s1691 = sshll.u32 %s1663, 4
          %s1692 = int_to_ptr.vmem [resolvable:$true] %s1691
          %1698 = sst [smem:[#allocation10]] 640
          %s1699 = scalar_lea.smem [#allocation10], 1
          %1700 = sst [smem:[%s1699]] 1920
          %s1701 = scalar_lea.smem [#allocation10], 2
          %1702 = sst [smem:[%s1701]] 5
          %s1703 = scalar_lea.smem [#allocation10], 3
          %1704 = sst [smem:[%s1703]] 128
          %s1705 = scalar_lea.smem [#allocation10], 4
          %1706 = sst [smem:[%s1705]] 128
          %s1707 = scalar_lea.smem [#allocation10], 5
          %1708 = sst [smem:[%s1707]] 8
          %1710 = dma.general %s1692, 5120, %s1674, %s1660, [#allocation9], [#allocation10], %s1690, 0
        $region48: #{tpu_custom_call.1} parent=31 // pred_fallthru
          _
      $region32: #{tpu_custom_call.1} parent=5 // pred_fallthru
        _
      %p1711 = scmp.le.s32.totalorder 2, %s14
      // Predicated region
      $region49: #{tpu_custom_call.1} parent=5 // pred_check
        %p1712 = pneg %p1711
      $region50: #{tpu_custom_call.1} parent=5 // pred_check_branch
        %1714 = sbr.rel (%p1712) target = $region52
      $region51: #{tpu_custom_call.1} parent=5 // pred_region
        %s1715 = ssub.s32 %s14, 2
        // Predicated region
        $region53: #{tpu_custom_call.1} parent=51 // pred_check
          %p1716 = pneg %p125
        $region54: #{tpu_custom_call.1} parent=51 // pred_check_branch
          %1718 = sbr.rel (%p1716) target = $region56
        $region55: #{tpu_custom_call.1} parent=51 // pred_region
          %s1719 = sand.u32 %s110, 1
          %s1720 = scalar_lea.sflag [#allocation4], %s1719
          %s1721 = sand.u32 %s110, 1
          %s1722 = smul.addr %s1721, 320
          %s1723 = scalar_lea.vmem [#allocation8], %s1722
          %1724 = dma.done %s1720, 5120
        $region56: #{tpu_custom_call.1} parent=51 // pred_fallthru
          _
      $region52: #{tpu_custom_call.1} parent=5 // pred_fallthru
        _
    $region6: #{tpu_custom_call.1} parent=1 // loop_footer
      %s18 = sadd.s32 1, %s14
    $region7: #{tpu_custom_call.1} parent=1 // loop_footer_branch
      %13 = sbr.rel target = $region3
    $region8: #{tpu_custom_call.1} parent=1 // loop_exit
      _
    %1725 = vsyncpa [#allocation4], 1
    %s1726 = scalar_lea.sflag [#allocation4], 1
    %1727 = vsyncpa %s1726, 1
    %1728 = vsyncpa [#allocation5], 1
    %s1729 = scalar_lea.sflag [#allocation5], 1
    %1730 = vsyncpa %s1729, 1
    %1731 = vsyncpa [#allocation7], 1

</llo_original>
